<compile_context>
chip_gen: v6e
topology: v6e:2x2x1
jax: 0.10.0
libtpu: 0.0.40
codegen_flags: <defaults>
</compile_context>

<pallas_src>
import functools

import jax
import jax.numpy as jnp
from jax.experimental import pallas as pl
from jax.experimental.pallas import tpu as pltpu

EPS = 1e-5


def _make_kernel(N, H, W, C):
    """Fused BN->ReLU->conv3x3->BN->ReLU->conv3x3->(+x) on a lane-dense (N*H, W*C) slab."""
    NH, WC = N * H, W * C
    h_pow2 = (H & (H - 1)) == 0

    def kernel(x_ref, pd_ref, pu_ref, vec_ref, w1_ref, w2_ref, out_ref):
        x = x_ref[...]                              # (NH, WC) f32, lane-dense
        pd = pd_ref[...]                            # (WC, C)  channel pooling, 1/count folded in
        pu = pu_ref[...]                            # (C, WC)  broadcast channels back to lanes
        g1, be1 = vec_ref[0:1, :], vec_ref[1:2, :]
        g2, be2 = vec_ref[2:3, :], vec_ref[3:4, :]
        b2l = vec_ref[4:5, :]

        # Per-image y-boundary masks built in vregs (no extra input / masked loads).
        rows = jax.lax.broadcasted_iota(jnp.int32, (NH, 1), 0)
        y = (rows & (H - 1)) if h_pow2 else jax.lax.rem(rows, H)
        mtop = (y > 0).astype(jnp.float32)          # 1.0 where the row above is in the same image
        mbot = (y < H - 1).astype(jnp.float32)      # 1.0 where the row below is in the same image

        def bn_relu(a, g, b):
            # One-pass batch stats (biased var, like PyTorch training BN):
            # var = E[x^2] - mean^2; per-channel pooling over (n, y, x) is a column sum
            # followed by two skinny matmuls (pool-down to C, broadcast back to WC lanes).
            s1 = jnp.sum(a, axis=0, keepdims=True)            # (1, WC)
            s2 = jnp.sum(a * a, axis=0, keepdims=True)        # (1, WC)
            stats = jnp.concatenate([s1, s2], axis=0)         # (2, WC)
            mom = jnp.dot(jnp.dot(stats, pd, preferred_element_type=jnp.float32),
                          pu, preferred_element_type=jnp.float32)   # (2, WC)
            mean = mom[0:1, :]
            var = mom[1:2, :] - mean * mean
            scale = g * jax.lax.rsqrt(var + EPS)
            shift = b - mean * scale
            return jnp.maximum(a * scale + shift, 0.0)

        def conv3x3(h, w_ref):
            # 3x3 / stride-1 / pad-1 conv as ONE lane-dense matmul against banded weights
            # laid out [W_up | W_mid | W_dn] along the output dim (K = WC, Nout = 3*WC).
            # The y-shift is applied to the matmul *result* via pltpu.roll (XLU) and the
            # boundary masks zero both cross-image rows and the cyclic wrap rows.
            hb = h.astype(w_ref.dtype)                                    # single LHS cast
            p = jnp.dot(hb, w_ref[...], preferred_element_type=jnp.float32)   # (NH, 3*WC)
            up = pltpu.roll(p[:, 0:WC], shift=1, axis=0) * mtop               # row y-1
            dn = pltpu.roll(p[:, 2 * WC:3 * WC], shift=NH - 1, axis=0) * mbot  # row y+1
            return up + p[:, WC:2 * WC] + dn

        h1 = bn_relu(x, g1, be1)
        y1 = conv3x3(h1, w1_ref)     # conv1 bias omitted: exactly cancelled by BN2 centering
        h2 = bn_relu(y1, g2, be2)
        y2 = conv3x3(h2, w2_ref) + b2l
        out_ref[...] = (y2 + x).astype(out_ref.dtype)   # identity residual (shortcut=None)

    return kernel


@functools.partial(jax.jit, static_argnames=("matmul_dtype",))
def basic_block_forward(x_nchw, params, matmul_dtype=jnp.bfloat16):
    """NCHW in/out wrapper around the fused slab kernel.

    TODO(synk): in a full PreActResNet the activation should stay in the lane-dense
    (N*H, W*C) slab between blocks (and several blocks should share one pallas_call);
    the NCHW <-> slab conversion here exists only to match the PyTorch module boundary.
    """
    N, C, H, W = x_nchw.shape
    Cout = params["w2"].shape[-1]
    assert params["w1"].shape[2] == C and params["w1"].shape[3] == Cout
    assert C == Cout, "identity shortcut requires inplanes == planes"
    NH, WC = N * H, W * C

    x2d = jnp.transpose(x_nchw, (0, 2, 3, 1)).astype(jnp.float32).reshape(NH, WC)

    # --- layout-lowered parameters (built once per compile) ---------------------
    def band_weights_cat(w):        # (3,3,Ci,Co) HWIO -> (W*Ci, 3*W*Co) = [up | mid | dn]
        Ci, Co = w.shape[2], w.shape[3]
        wb = jnp.zeros((3, W * Ci, W * Co), jnp.float32)
        for xo in range(W):
            for kx in range(3):
                xi = xo + kx - 1
                if 0 <= xi < W:
                    wb = wb.at[:, xi * Ci:(xi + 1) * Ci, xo * Co:(xo + 1) * Co].set(w[:, kx])
        return jnp.concatenate([wb[0], wb[1], wb[2]], axis=1).astype(matmul_dtype)

    w1c = band_weights_cat(params["w1"])
    w2c = band_weights_cat(params["w2"])

    # Factored channel pooling: (stats @ pool_down) @ pool_up == stats @ tile(eye(C),(W,W)).
    eye = jnp.eye(C, dtype=jnp.float32)
    pool_down = jnp.tile(eye, (W, 1)) * (1.0 / float(N * H * W))   # (WC, C), 1/count folded in
    pool_up = jnp.tile(eye, (1, W))                                # (C, WC)

    def lane(v):                                # (C,) -> (WC,) per-lane broadcast
        return jnp.tile(v.astype(jnp.float32), W)

    vecp = jnp.stack([lane(params["g1"]), lane(params["be1"]),
                      lane(params["g2"]), lane(params["be2"]),
                      lane(params["b2"])], axis=0)                  # (5, WC)

    vmem = pl.BlockSpec(memory_space=pltpu.MemorySpace.VMEM)
    out2d = pl.pallas_call(
        _make_kernel(N, H, W, C),
        out_shape=jax.ShapeDtypeStruct((NH, WC), jnp.float32),
        in_specs=[vmem] * 6,
        out_specs=vmem,
        input_output_aliases={0: 0},            # output reuses x's HBM slab
    )(x2d, pool_down, pool_up, vecp, w1c, w2c)

    return jnp.transpose(out2d.reshape(N, H, W, C), (0, 3, 1, 2))   # back to NCHW


def init_params(key, inplanes, planes):
    k = jax.random.split(key, 8)
    g1 = 1.0 + 0.1 * jax.random.normal(k[0], (inplanes,), jnp.float32)
    be1 = 0.1 * jax.random.normal(k[1], (inplanes,), jnp.float32)
    g2 = 1.0 + 0.1 * jax.random.normal(k[2], (planes,), jnp.float32)
    be2 = 0.1 * jax.random.normal(k[3], (planes,), jnp.float32)
    s1 = (2.0 / (9 * inplanes)) ** 0.5
    s2 = (2.0 / (9 * planes)) ** 0.5
    w1 = s1 * jax.random.normal(k[4], (3, 3, inplanes, planes), jnp.float32)   # HWIO
    w2 = s2 * jax.random.normal(k[5], (3, 3, planes, planes), jnp.float32)
    # b1 is kept in the params/reference (as in PyTorch) but is mathematically
    # annihilated by BN2's mean subtraction, so the kernel never reads it.
    b1 = 0.1 * jax.random.normal(k[6], (planes,), jnp.float32)
    b2 = 0.1 * jax.random.normal(k[7], (planes,), jnp.float32)
    return dict(g1=g1, be1=be1, w1=w1, b1=b1, g2=g2, be2=be2, w2=w2, b2=b2)


def reference(x_nchw, params):
    """Pure-JAX reference of the same forward pass (NHWC internally, includes b1)."""
    x = jnp.transpose(x_nchw, (0, 2, 3, 1)).astype(jnp.float32)

    def bn_relu(h, g, b):
        m = jnp.mean(h, axis=(0, 1, 2), keepdims=True)
        v = jnp.mean((h - m) ** 2, axis=(0, 1, 2), keepdims=True)
        return jnp.maximum((h - m) * jax.lax.rsqrt(v + EPS)
                           * g.reshape(1, 1, 1, -1) + b.reshape(1, 1, 1, -1), 0.0)

    def conv(h, w, b):
        y = jax.lax.conv_general_dilated(
            h, w, window_strides=(1, 1), padding=((1, 1), (1, 1)),
            dimension_numbers=("NHWC", "HWIO", "NHWC"))
        return y + b.reshape(1, 1, 1, -1)

    h = bn_relu(x, params["g1"], params["be1"])
    h = conv(h, params["w1"], params["b1"])
    h = bn_relu(h, params["g2"], params["be2"])
    h = conv(h, params["w2"], params["b2"])
    return jnp.transpose(h + x, (0, 3, 1, 2))


if __name__ == "__main__":
    key = jax.random.PRNGKey(0)
    kx, kp = jax.random.split(key)

    # inplanes == planes == 8, stride == 1; W*C == 128 lanes, N*H == 128 rows
    # (fills a v5e MXU pass; still tiny data).
    N, C, H, W = 8, 8, 16, 16
    x = jax.random.normal(kx, (N, C, H, W), jnp.float32)
    params = init_params(kp, C, C)

    ref = jax.block_until_ready(reference(x, params))

    # Strict check: f32 matmul path.
    out_f32 = jax.block_until_ready(basic_block_forward(x, params, matmul_dtype=jnp.float32))
    assert out_f32.shape == (N, C, H, W)
    assert jnp.allclose(out_f32, ref, atol=3e-3, rtol=3e-3), "f32 kernel mismatch vs reference"

    # bf16 MXU fast path (v5e/v6e/v7x); accumulation / stats / elementwise stay in f32.
    out_bf16 = jax.block_until_ready(basic_block_forward(x, params, matmul_dtype=jnp.bfloat16))
    assert out_bf16.shape == (N, C, H, W)
    assert jnp.allclose(out_bf16, ref, atol=5e-2, rtol=5e-2), "bf16 kernel mismatch vs reference"

    print("KERNEL_OK")
</pallas_src>

<mosaic_0001>
module attributes {stable_mosaic.version = 11 : i64} {
  func.func @kernel(%arg0: memref<128x128xf32, #tpu.memory_space<vmem>>, %arg1: memref<128x8xf32, #tpu.memory_space<vmem>>, %arg2: memref<8x128xf32, #tpu.memory_space<vmem>>, %arg3: memref<5x128xf32, #tpu.memory_space<vmem>>, %arg4: memref<128x384xf32, #tpu.memory_space<vmem>>, %arg5: memref<128x384xf32, #tpu.memory_space<vmem>>, %arg6: memref<128x128xf32, #tpu.memory_space<vmem>>) attributes {dimension_semantics = [], scalar_prefetch = 0 : i64, scratch_operands = 0 : i64, tpu.core_type = #tpu.core_type<tc>} {
    %c0 = arith.constant 0 : index
    %c0_0 = arith.constant 0 : index
    %0 = vector.load %arg0[%c0, %c0_0] : memref<128x128xf32, #tpu.memory_space<vmem>>, vector<128x128xf32>
    %c0_1 = arith.constant 0 : index
    %c0_2 = arith.constant 0 : index
    %1 = vector.load %arg1[%c0_1, %c0_2] : memref<128x8xf32, #tpu.memory_space<vmem>>, vector<128x8xf32>
    %c0_3 = arith.constant 0 : index
    %c0_4 = arith.constant 0 : index
    %2 = vector.load %arg2[%c0_3, %c0_4] : memref<8x128xf32, #tpu.memory_space<vmem>>, vector<8x128xf32>
    %c0_5 = arith.constant 0 : index
    %c0_6 = arith.constant 0 : index
    %3 = vector.load %arg3[%c0_5, %c0_6] : memref<5x128xf32, #tpu.memory_space<vmem>>, vector<1x128xf32>
    %c1 = arith.constant 1 : index
    %c0_7 = arith.constant 0 : index
    %4 = vector.load %arg3[%c1, %c0_7] : memref<5x128xf32, #tpu.memory_space<vmem>>, vector<1x128xf32>
    %c2 = arith.constant 2 : index
    %c0_8 = arith.constant 0 : index
    %5 = vector.load %arg3[%c2, %c0_8] : memref<5x128xf32, #tpu.memory_space<vmem>>, vector<1x128xf32>
    %c3 = arith.constant 3 : index
    %c0_9 = arith.constant 0 : index
    %6 = vector.load %arg3[%c3, %c0_9] : memref<5x128xf32, #tpu.memory_space<vmem>>, vector<1x128xf32>
    %c4 = arith.constant 4 : index
    %c0_10 = arith.constant 0 : index
    %7 = vector.load %arg3[%c4, %c0_10] : memref<5x128xf32, #tpu.memory_space<vmem>>, vector<1x128xf32>
    %8 = tpu.iota {dimensions = array<i32: 0>} : vector<128x1xi32>
    %c15_i32 = arith.constant 15 : i32
    %9 = vector.broadcast %c15_i32 : i32 to vector<128x1xi32>
    %10 = arith.andi %8, %9 : vector<128x1xi32>
    %c0_i32 = arith.constant 0 : i32
    %11 = vector.broadcast %c0_i32 : i32 to vector<128x1xi32>
    %12 = arith.cmpi sgt, %10, %11 : vector<128x1xi32>
    %13 = arith.extui %12 : vector<128x1xi1> to vector<128x1xi32>
    %14 = arith.sitofp %13 : vector<128x1xi32> to vector<128x1xf32>
    %c15_i32_11 = arith.constant 15 : i32
    %15 = vector.broadcast %c15_i32_11 : i32 to vector<128x1xi32>
    %16 = arith.cmpi slt, %10, %15 : vector<128x1xi32>
    %17 = arith.extui %16 : vector<128x1xi1> to vector<128x1xi32>
    %18 = arith.sitofp %17 : vector<128x1xi32> to vector<128x1xf32>
    %cst = arith.constant dense<0.000000e+00> : vector<128xf32>
    %19 = vector.multi_reduction <add>, %0, %cst [0] : vector<128x128xf32> to vector<128xf32>
    %20 = vector.shape_cast %19 : vector<128xf32> to vector<1x128xf32>
    %21 = arith.mulf %0, %0 : vector<128x128xf32>
    %cst_12 = arith.constant dense<0.000000e+00> : vector<128xf32>
    %22 = vector.multi_reduction <add>, %21, %cst_12 [0] : vector<128x128xf32> to vector<128xf32>
    %23 = vector.shape_cast %22 : vector<128xf32> to vector<1x128xf32>
    %24 = tpu.concatenate %20, %23 in 0 : vector<1x128xf32>, vector<1x128xf32> -> vector<2x128xf32>
    %cst_13 = arith.constant dense<0.000000e+00> : vector<2x8xf32>
    %25 = tpu.matmul %24, %1, %cst_13 {dimension_numbers = #tpu.dot_dimension_numbers<[1], [0], [0], [1], [0, 0, 1, 1], [], []>} : vector<2x128xf32>, vector<128x8xf32>, vector<2x8xf32> -> vector<2x8xf32>
    %cst_14 = arith.constant dense<0.000000e+00> : vector<2x128xf32>
    %26 = tpu.matmul %25, %2, %cst_14 {dimension_numbers = #tpu.dot_dimension_numbers<[1], [0], [0], [1], [0, 0, 1, 1], [], []>} : vector<2x8xf32>, vector<8x128xf32>, vector<2x128xf32> -> vector<2x128xf32>
    %27 = vector.extract_strided_slice %26 {offsets = [0, 0], sizes = [1, 128], strides = [1, 1]} : vector<2x128xf32> to vector<1x128xf32>
    %28 = vector.extract_strided_slice %26 {offsets = [1, 0], sizes = [1, 128], strides = [1, 1]} : vector<2x128xf32> to vector<1x128xf32>
    %29 = arith.mulf %27, %27 : vector<1x128xf32>
    %30 = arith.subf %28, %29 : vector<1x128xf32>
    %cst_15 = arith.constant 9.99999974E-6 : f32
    %31 = vector.broadcast %cst_15 : f32 to vector<1x128xf32>
    %32 = arith.addf %30, %31 : vector<1x128xf32>
    %33 = math.rsqrt %32 : vector<1x128xf32>
    %34 = arith.mulf %3, %33 : vector<1x128xf32>
    %35 = arith.mulf %27, %34 : vector<1x128xf32>
    %36 = arith.subf %4, %35 : vector<1x128xf32>
    %37 = vector.broadcast %34 : vector<1x128xf32> to vector<128x128xf32>
    %38 = arith.mulf %0, %37 : vector<128x128xf32>
    %39 = vector.broadcast %36 : vector<1x128xf32> to vector<128x128xf32>
    %40 = arith.addf %38, %39 : vector<128x128xf32>
    %cst_16 = arith.constant 0.000000e+00 : f32
    %41 = vector.broadcast %cst_16 : f32 to vector<128x128xf32>
    %42 = arith.maximumf %40, %41 : vector<128x128xf32>
    %c0_17 = arith.constant 0 : index
    %c0_18 = arith.constant 0 : index
    %43 = vector.load %arg4[%c0_17, %c0_18] : memref<128x384xf32, #tpu.memory_space<vmem>>, vector<128x384xf32>
    %cst_19 = arith.constant dense<0.000000e+00> : vector<128x384xf32>
    %44 = tpu.matmul %42, %43, %cst_19 {dimension_numbers = #tpu.dot_dimension_numbers<[1], [0], [0], [1], [0, 0, 1, 1], [], []>} : vector<128x128xf32>, vector<128x384xf32>, vector<128x384xf32> -> vector<128x384xf32>
    %45 = vector.extract_strided_slice %44 {offsets = [0, 0], sizes = [128, 128], strides = [1, 1]} : vector<128x384xf32> to vector<128x128xf32>
    %c1_i32 = arith.constant 1 : i32
    %46 = tpu.dynamic_rotate %45 by %c1_i32 dim 0 : vector<128x128xf32>, i32 -> vector<128x128xf32>
    %47 = vector.broadcast %14 : vector<128x1xf32> to vector<128x128xf32>
    %48 = arith.mulf %46, %47 : vector<128x128xf32>
    %49 = vector.extract_strided_slice %44 {offsets = [0, 256], sizes = [128, 128], strides = [1, 1]} : vector<128x384xf32> to vector<128x128xf32>
    %c127_i32 = arith.constant 127 : i32
    %50 = tpu.dynamic_rotate %49 by %c127_i32 dim 0 : vector<128x128xf32>, i32 -> vector<128x128xf32>
    %51 = vector.broadcast %18 : vector<128x1xf32> to vector<128x128xf32>
    %52 = arith.mulf %50, %51 : vector<128x128xf32>
    %53 = vector.extract_strided_slice %44 {offsets = [0, 128], sizes = [128, 128], strides = [1, 1]} : vector<128x384xf32> to vector<128x128xf32>
    %54 = arith.addf %48, %53 : vector<128x128xf32>
    %55 = arith.addf %54, %52 : vector<128x128xf32>
    %cst_20 = arith.constant dense<0.000000e+00> : vector<128xf32>
    %56 = vector.multi_reduction <add>, %55, %cst_20 [0] : vector<128x128xf32> to vector<128xf32>
    %57 = vector.shape_cast %56 : vector<128xf32> to vector<1x128xf32>
    %58 = arith.mulf %55, %55 : vector<128x128xf32>
    %cst_21 = arith.constant dense<0.000000e+00> : vector<128xf32>
    %59 = vector.multi_reduction <add>, %58, %cst_21 [0] : vector<128x128xf32> to vector<128xf32>
    %60 = vector.shape_cast %59 : vector<128xf32> to vector<1x128xf32>
    %61 = tpu.concatenate %57, %60 in 0 : vector<1x128xf32>, vector<1x128xf32> -> vector<2x128xf32>
    %cst_22 = arith.constant dense<0.000000e+00> : vector<2x8xf32>
    %62 = tpu.matmul %61, %1, %cst_22 {dimension_numbers = #tpu.dot_dimension_numbers<[1], [0], [0], [1], [0, 0, 1, 1], [], []>} : vector<2x128xf32>, vector<128x8xf32>, vector<2x8xf32> -> vector<2x8xf32>
    %cst_23 = arith.constant dense<0.000000e+00> : vector<2x128xf32>
    %63 = tpu.matmul %62, %2, %cst_23 {dimension_numbers = #tpu.dot_dimension_numbers<[1], [0], [0], [1], [0, 0, 1, 1], [], []>} : vector<2x8xf32>, vector<8x128xf32>, vector<2x128xf32> -> vector<2x128xf32>
    %64 = vector.extract_strided_slice %63 {offsets = [0, 0], sizes = [1, 128], strides = [1, 1]} : vector<2x128xf32> to vector<1x128xf32>
    %65 = vector.extract_strided_slice %63 {offsets = [1, 0], sizes = [1, 128], strides = [1, 1]} : vector<2x128xf32> to vector<1x128xf32>
    %66 = arith.mulf %64, %64 : vector<1x128xf32>
    %67 = arith.subf %65, %66 : vector<1x128xf32>
    %cst_24 = arith.constant 9.99999974E-6 : f32
    %68 = vector.broadcast %cst_24 : f32 to vector<1x128xf32>
    %69 = arith.addf %67, %68 : vector<1x128xf32>
    %70 = math.rsqrt %69 : vector<1x128xf32>
    %71 = arith.mulf %5, %70 : vector<1x128xf32>
    %72 = arith.mulf %64, %71 : vector<1x128xf32>
    %73 = arith.subf %6, %72 : vector<1x128xf32>
    %74 = vector.broadcast %71 : vector<1x128xf32> to vector<128x128xf32>
    %75 = arith.mulf %55, %74 : vector<128x128xf32>
    %76 = vector.broadcast %73 : vector<1x128xf32> to vector<128x128xf32>
    %77 = arith.addf %75, %76 : vector<128x128xf32>
    %cst_25 = arith.constant 0.000000e+00 : f32
    %78 = vector.broadcast %cst_25 : f32 to vector<128x128xf32>
    %79 = arith.maximumf %77, %78 : vector<128x128xf32>
    %c0_26 = arith.constant 0 : index
    %c0_27 = arith.constant 0 : index
    %80 = vector.load %arg5[%c0_26, %c0_27] : memref<128x384xf32, #tpu.memory_space<vmem>>, vector<128x384xf32>
    %cst_28 = arith.constant dense<0.000000e+00> : vector<128x384xf32>
    %81 = tpu.matmul %79, %80, %cst_28 {dimension_numbers = #tpu.dot_dimension_numbers<[1], [0], [0], [1], [0, 0, 1, 1], [], []>} : vector<128x128xf32>, vector<128x384xf32>, vector<128x384xf32> -> vector<128x384xf32>
    %82 = vector.extract_strided_slice %81 {offsets = [0, 0], sizes = [128, 128], strides = [1, 1]} : vector<128x384xf32> to vector<128x128xf32>
    %c1_i32_29 = arith.constant 1 : i32
    %83 = tpu.dynamic_rotate %82 by %c1_i32_29 dim 0 : vector<128x128xf32>, i32 -> vector<128x128xf32>
    %84 = vector.broadcast %14 : vector<128x1xf32> to vector<128x128xf32>
    %85 = arith.mulf %83, %84 : vector<128x128xf32>
    %86 = vector.extract_strided_slice %81 {offsets = [0, 256], sizes = [128, 128], strides = [1, 1]} : vector<128x384xf32> to vector<128x128xf32>
    %c127_i32_30 = arith.constant 127 : i32
    %87 = tpu.dynamic_rotate %86 by %c127_i32_30 dim 0 : vector<128x128xf32>, i32 -> vector<128x128xf32>
    %88 = vector.broadcast %18 : vector<128x1xf32> to vector<128x128xf32>
    %89 = arith.mulf %87, %88 : vector<128x128xf32>
    %90 = vector.extract_strided_slice %81 {offsets = [0, 128], sizes = [128, 128], strides = [1, 1]} : vector<128x384xf32> to vector<128x128xf32>
    %91 = arith.addf %85, %90 : vector<128x128xf32>
    %92 = arith.addf %91, %89 : vector<128x128xf32>
    %93 = vector.broadcast %7 : vector<1x128xf32> to vector<128x128xf32>
    %94 = arith.addf %92, %93 : vector<128x128xf32>
    %95 = arith.addf %94, %0 : vector<128x128xf32>
    %c0_31 = arith.constant 0 : index
    %c0_32 = arith.constant 0 : index
    %96 = vector.load %arg6[%c0_31, %c0_32] : memref<128x128xf32, #tpu.memory_space<vmem>>, vector<128x128xf32>
    tpu.vector_store %arg6[%c0_31, %c0_32], %95 {strides = array<i32>} : memref<128x128xf32, #tpu.memory_space<vmem>>, vector<128x128xf32>,
    return
  }
}

</mosaic_0001>

<llo_original>
// kernel: tile.44
$region0: #{tile.44}
  %s0 = inlined_call_operand.vmem [shape: f32[8,16,8], index: 0, kind: input, shape index: {}]
  %s1 = inlined_call_operand.vmem [shape: f32[8,128], index: 1, kind: output, shape index: {}]
  %s2 = smov 3
  %v3 = vld [vmem:[%s0] ss:$16 sm:%s2]
  %s4 = smov 12
  %v5 = vld [vmem:[%s0] ss:$16 sm:%s4]
  %vm6 = vcmask 1043458
  %v7 = vsel %vm6, %v5, %v3
  %s8 = smov 48
  %v9 = vld [vmem:[%s0] ss:$16 sm:%s8]
  %vm10 = vcmask 1045508
  %v11 = vsel %vm10, %v9, %v7
  %s12 = smov 192
  %v13 = vld [vmem:[%s0] ss:$16 sm:%s12]
  %vm14 = vcmask 1047558
  %v15 = vsel %vm14, %v13, %v11
  %vm16 = vcmask 64512
  %17 = vst.msk [vmem:[%s1] sm:$0xff] %vm16, %v15
  %s18 = scalar_lea.vmem %s0, 15
  %s19 = smov 3
  %v20 = vld [vmem:[%s18] ss:$16 sm:%s19]
  %s21 = scalar_lea.vmem %s0, 15
  %s22 = smov 12
  %v23 = vld [vmem:[%s21] ss:$16 sm:%s22]
  %vm24 = vcmask 1043458
  %v25 = vsel %vm24, %v23, %v20
  %s26 = scalar_lea.vmem %s0, 15
  %s27 = smov 48
  %v28 = vld [vmem:[%s26] ss:$16 sm:%s27]
  %vm29 = vcmask 1045508
  %v30 = vsel %vm29, %v28, %v25
  %s31 = scalar_lea.vmem %s0, 15
  %s32 = smov 192
  %v33 = vld [vmem:[%s31] ss:$16 sm:%s32]
  %vm34 = vcmask 1047558
  %v35 = vsel %vm34, %v33, %v30
  %36 = vrot.lane.b32.xlu0 %v35, 120
  %v37 = vpop.permute.xlu0 %36
  %vm38 = vcmask 1048512
  %39 = vst.msk [vmem:[%s1] sm:$0xff] %vm38, %v37
  %s40 = scalar_lea.vmem %s0, 14
  %s41 = smov 3
  %v42 = vld [vmem:[%s40] ss:$16 sm:%s41]
  %s43 = scalar_lea.vmem %s0, 14
  %s44 = smov 12
  %v45 = vld [vmem:[%s43] ss:$16 sm:%s44]
  %vm46 = vcmask 1043458
  %v47 = vsel %vm46, %v45, %v42
  %s48 = scalar_lea.vmem %s0, 14
  %s49 = smov 48
  %v50 = vld [vmem:[%s48] ss:$16 sm:%s49]
  %vm51 = vcmask 1045508
  %v52 = vsel %vm51, %v50, %v47
  %s53 = scalar_lea.vmem %s0, 14
  %s54 = smov 192
  %v55 = vld [vmem:[%s53] ss:$16 sm:%s54]
  %vm56 = vcmask 1047558
  %v57 = vsel %vm56, %v55, %v52
  %58 = vrot.lane.b32.xlu0 %v57, 112
  %v59 = vpop.permute.xlu0 %58
  %vm60 = vcmask 982912
  %61 = vst.msk [vmem:[%s1] sm:$0xff] %vm60, %v59
  %s62 = scalar_lea.vmem %s0, 13
  %s63 = smov 3
  %v64 = vld [vmem:[%s62] ss:$16 sm:%s63]
  %s65 = scalar_lea.vmem %s0, 13
  %s66 = smov 12
  %v67 = vld [vmem:[%s65] ss:$16 sm:%s66]
  %vm68 = vcmask 1043458
  %v69 = vsel %vm68, %v67, %v64
  %s70 = scalar_lea.vmem %s0, 13
  %s71 = smov 48
  %v72 = vld [vmem:[%s70] ss:$16 sm:%s71]
  %vm73 = vcmask 1045508
  %v74 = vsel %vm73, %v72, %v69
  %s75 = scalar_lea.vmem %s0, 13
  %s76 = smov 192
  %v77 = vld [vmem:[%s75] ss:$16 sm:%s76]
  %vm78 = vcmask 1047558
  %v79 = vsel %vm78, %v77, %v74
  %80 = vrot.lane.b32.xlu0 %v79, 104
  %v81 = vpop.permute.xlu0 %80
  %vm82 = vcmask 917312
  %83 = vst.msk [vmem:[%s1] sm:$0xff] %vm82, %v81
  %s84 = scalar_lea.vmem %s0, 12
  %s85 = smov 3
  %v86 = vld [vmem:[%s84] ss:$16 sm:%s85]
  %s87 = scalar_lea.vmem %s0, 12
  %s88 = smov 12
  %v89 = vld [vmem:[%s87] ss:$16 sm:%s88]
  %vm90 = vcmask 1043458
  %v91 = vsel %vm90, %v89, %v86
  %s92 = scalar_lea.vmem %s0, 12
  %s93 = smov 48
  %v94 = vld [vmem:[%s92] ss:$16 sm:%s93]
  %vm95 = vcmask 1045508
  %v96 = vsel %vm95, %v94, %v91
  %s97 = scalar_lea.vmem %s0, 12
  %s98 = smov 192
  %v99 = vld [vmem:[%s97] ss:$16 sm:%s98]
  %vm100 = vcmask 1047558
  %v101 = vsel %vm100, %v99, %v96
  %102 = vrot.lane.b32.xlu0 %v101, 96
  %v103 = vpop.permute.xlu0 %102
  %vm104 = vcmask 851712
  %105 = vst.msk [vmem:[%s1] sm:$0xff] %vm104, %v103
  %s106 = scalar_lea.vmem %s0, 11
  %s107 = smov 3
  %v108 = vld [vmem:[%s106] ss:$16 sm:%s107]
  %s109 = scalar_lea.vmem %s0, 11
  %s110 = smov 12
  %v111 = vld [vmem:[%s109] ss:$16 sm:%s110]
  %vm112 = vcmask 1043458
  %v113 = vsel %vm112, %v111, %v108
  %s114 = scalar_lea.vmem %s0, 11
  %s115 = smov 48
  %v116 = vld [vmem:[%s114] ss:$16 sm:%s115]
  %vm117 = vcmask 1045508
  %v118 = vsel %vm117, %v116, %v113
  %s119 = scalar_lea.vmem %s0, 11
  %s120 = smov 192
  %v121 = vld [vmem:[%s119] ss:$16 sm:%s120]
  %vm122 = vcmask 1047558
  %v123 = vsel %vm122, %v121, %v118
  %124 = vrot.lane.b32.xlu0 %v123, 88
  %v125 = vpop.permute.xlu0 %124
  %vm126 = vcmask 786112
  %127 = vst.msk [vmem:[%s1] sm:$0xff] %vm126, %v125
  %s128 = scalar_lea.vmem %s0, 10
  %s129 = smov 3
  %v130 = vld [vmem:[%s128] ss:$16 sm:%s129]
  %s131 = scalar_lea.vmem %s0, 10
  %s132 = smov 12
  %v133 = vld [vmem:[%s131] ss:$16 sm:%s132]
  %vm134 = vcmask 1043458
  %v135 = vsel %vm134, %v133, %v130
  %s136 = scalar_lea.vmem %s0, 10
  %s137 = smov 48
  %v138 = vld [vmem:[%s136] ss:$16 sm:%s137]
  %vm139 = vcmask 1045508
  %v140 = vsel %vm139, %v138, %v135
  %s141 = scalar_lea.vmem %s0, 10
  %s142 = smov 192
  %v143 = vld [vmem:[%s141] ss:$16 sm:%s142]
  %vm144 = vcmask 1047558
  %v145 = vsel %vm144, %v143, %v140
  %146 = vrot.lane.b32.xlu0 %v145, 80
  %v147 = vpop.permute.xlu0 %146
  %vm148 = vcmask 720512
  %149 = vst.msk [vmem:[%s1] sm:$0xff] %vm148, %v147
  %s150 = scalar_lea.vmem %s0, 9
  %s151 = smov 3
  %v152 = vld [vmem:[%s150] ss:$16 sm:%s151]
  %s153 = scalar_lea.vmem %s0, 9
  %s154 = smov 12
  %v155 = vld [vmem:[%s153] ss:$16 sm:%s154]
  %vm156 = vcmask 1043458
  %v157 = vsel %vm156, %v155, %v152
  %s158 = scalar_lea.vmem %s0, 9
  %s159 = smov 48
  %v160 = vld [vmem:[%s158] ss:$16 sm:%s159]
  %vm161 = vcmask 1045508
  %v162 = vsel %vm161, %v160, %v157
  %s163 = scalar_lea.vmem %s0, 9
  %s164 = smov 192
  %v165 = vld [vmem:[%s163] ss:$16 sm:%s164]
  %vm166 = vcmask 1047558
  %v167 = vsel %vm166, %v165, %v162
  %168 = vrot.lane.b32.xlu0 %v167, 72
  %v169 = vpop.permute.xlu0 %168
  %vm170 = vcmask 654912
  %171 = vst.msk [vmem:[%s1] sm:$0xff] %vm170, %v169
  %s172 = scalar_lea.vmem %s0, 8
  %s173 = smov 3
  %v174 = vld [vmem:[%s172] ss:$16 sm:%s173]
  %s175 = scalar_lea.vmem %s0, 8
  %s176 = smov 12
  %v177 = vld [vmem:[%s175] ss:$16 sm:%s176]
  %vm178 = vcmask 1043458
  %v179 = vsel %vm178, %v177, %v174
  %s180 = scalar_lea.vmem %s0, 8
  %s181 = smov 48
  %v182 = vld [vmem:[%s180] ss:$16 sm:%s181]
  %vm183 = vcmask 1045508
  %v184 = vsel %vm183, %v182, %v179
  %s185 = scalar_lea.vmem %s0, 8
  %s186 = smov 192
  %v187 = vld [vmem:[%s185] ss:$16 sm:%s186]
  %vm188 = vcmask 1047558
  %v189 = vsel %vm188, %v187, %v184
  %190 = vrot.lane.b32.xlu0 %v189, 64
  %v191 = vpop.permute.xlu0 %190
  %vm192 = vcmask 589312
  %193 = vst.msk [vmem:[%s1] sm:$0xff] %vm192, %v191
  %s194 = scalar_lea.vmem %s0, 7
  %s195 = smov 3
  %v196 = vld [vmem:[%s194] ss:$16 sm:%s195]
  %s197 = scalar_lea.vmem %s0, 7
  %s198 = smov 12
  %v199 = vld [vmem:[%s197] ss:$16 sm:%s198]
  %vm200 = vcmask 1043458
  %v201 = vsel %vm200, %v199, %v196
  %s202 = scalar_lea.vmem %s0, 7
  %s203 = smov 48
  %v204 = vld [vmem:[%s202] ss:$16 sm:%s203]
  %vm205 = vcmask 1045508
  %v206 = vsel %vm205, %v204, %v201
  %s207 = scalar_lea.vmem %s0, 7
  %s208 = smov 192
  %v209 = vld [vmem:[%s207] ss:$16 sm:%s208]
  %vm210 = vcmask 1047558
  %v211 = vsel %vm210, %v209, %v206
  %212 = vrot.lane.b32.xlu0 %v211, 56
  %v213 = vpop.permute.xlu0 %212
  %vm214 = vcmask 523712
  %215 = vst.msk [vmem:[%s1] sm:$0xff] %vm214, %v213
  %s216 = scalar_lea.vmem %s0, 6
  %s217 = smov 3
  %v218 = vld [vmem:[%s216] ss:$16 sm:%s217]
  %s219 = scalar_lea.vmem %s0, 6
  %s220 = smov 12
  %v221 = vld [vmem:[%s219] ss:$16 sm:%s220]
  %vm222 = vcmask 1043458
  %v223 = vsel %vm222, %v221, %v218
  %s224 = scalar_lea.vmem %s0, 6
  %s225 = smov 48
  %v226 = vld [vmem:[%s224] ss:$16 sm:%s225]
  %vm227 = vcmask 1045508
  %v228 = vsel %vm227, %v226, %v223
  %s229 = scalar_lea.vmem %s0, 6
  %s230 = smov 192
  %v231 = vld [vmem:[%s229] ss:$16 sm:%s230]
  %vm232 = vcmask 1047558
  %v233 = vsel %vm232, %v231, %v228
  %234 = vrot.lane.b32.xlu0 %v233, 48
  %v235 = vpop.permute.xlu0 %234
  %vm236 = vcmask 458112
  %237 = vst.msk [vmem:[%s1] sm:$0xff] %vm236, %v235
  %s238 = scalar_lea.vmem %s0, 5
  %s239 = smov 3
  %v240 = vld [vmem:[%s238] ss:$16 sm:%s239]
  %s241 = scalar_lea.vmem %s0, 5
  %s242 = smov 12
  %v243 = vld [vmem:[%s241] ss:$16 sm:%s242]
  %vm244 = vcmask 1043458
  %v245 = vsel %vm244, %v243, %v240
  %s246 = scalar_lea.vmem %s0, 5
  %s247 = smov 48
  %v248 = vld [vmem:[%s246] ss:$16 sm:%s247]
  %vm249 = vcmask 1045508
  %v250 = vsel %vm249, %v248, %v245
  %s251 = scalar_lea.vmem %s0, 5
  %s252 = smov 192
  %v253 = vld [vmem:[%s251] ss:$16 sm:%s252]
  %vm254 = vcmask 1047558
  %v255 = vsel %vm254, %v253, %v250
  %256 = vrot.lane.b32.xlu0 %v255, 40
  %v257 = vpop.permute.xlu0 %256
  %vm258 = vcmask 392512
  %259 = vst.msk [vmem:[%s1] sm:$0xff] %vm258, %v257
  %s260 = scalar_lea.vmem %s0, 4
  %s261 = smov 3
  %v262 = vld [vmem:[%s260] ss:$16 sm:%s261]
  %s263 = scalar_lea.vmem %s0, 4
  %s264 = smov 12
  %v265 = vld [vmem:[%s263] ss:$16 sm:%s264]
  %vm266 = vcmask 1043458
  %v267 = vsel %vm266, %v265, %v262
  %s268 = scalar_lea.vmem %s0, 4
  %s269 = smov 48
  %v270 = vld [vmem:[%s268] ss:$16 sm:%s269]
  %vm271 = vcmask 1045508
  %v272 = vsel %vm271, %v270, %v267
  %s273 = scalar_lea.vmem %s0, 4
  %s274 = smov 192
  %v275 = vld [vmem:[%s273] ss:$16 sm:%s274]
  %vm276 = vcmask 1047558
  %v277 = vsel %vm276, %v275, %v272
  %278 = vrot.lane.b32.xlu0 %v277, 32
  %v279 = vpop.permute.xlu0 %278
  %vm280 = vcmask 326912
  %281 = vst.msk [vmem:[%s1] sm:$0xff] %vm280, %v279
  %s282 = scalar_lea.vmem %s0, 3
  %s283 = smov 3
  %v284 = vld [vmem:[%s282] ss:$16 sm:%s283]
  %s285 = scalar_lea.vmem %s0, 3
  %s286 = smov 12
  %v287 = vld [vmem:[%s285] ss:$16 sm:%s286]
  %vm288 = vcmask 1043458
  %v289 = vsel %vm288, %v287, %v284
  %s290 = scalar_lea.vmem %s0, 3
  %s291 = smov 48
  %v292 = vld [vmem:[%s290] ss:$16 sm:%s291]
  %vm293 = vcmask 1045508
  %v294 = vsel %vm293, %v292, %v289
  %s295 = scalar_lea.vmem %s0, 3
  %s296 = smov 192
  %v297 = vld [vmem:[%s295] ss:$16 sm:%s296]
  %vm298 = vcmask 1047558
  %v299 = vsel %vm298, %v297, %v294
  %300 = vrot.lane.b32.xlu0 %v299, 24
  %v301 = vpop.permute.xlu0 %300
  %vm302 = vcmask 261312
  %303 = vst.msk [vmem:[%s1] sm:$0xff] %vm302, %v301
  %s304 = scalar_lea.vmem %s0, 2
  %s305 = smov 3
  %v306 = vld [vmem:[%s304] ss:$16 sm:%s305]
  %s307 = scalar_lea.vmem %s0, 2
  %s308 = smov 12
  %v309 = vld [vmem:[%s307] ss:$16 sm:%s308]
  %vm310 = vcmask 1043458
  %v311 = vsel %vm310, %v309, %v306
  %s312 = scalar_lea.vmem %s0, 2
  %s313 = smov 48
  %v314 = vld [vmem:[%s312] ss:$16 sm:%s313]
  %vm315 = vcmask 1045508
  %v316 = vsel %vm315, %v314, %v311
  %s317 = scalar_lea.vmem %s0, 2
  %s318 = smov 192
  %v319 = vld [vmem:[%s317] ss:$16 sm:%s318]
  %vm320 = vcmask 1047558
  %v321 = vsel %vm320, %v319, %v316
  %322 = vrot.lane.b32.xlu0 %v321, 16
  %v323 = vpop.permute.xlu0 %322
  %vm324 = vcmask 195712
  %325 = vst.msk [vmem:[%s1] sm:$0xff] %vm324, %v323
  %s326 = scalar_lea.vmem %s0, 1
  %s327 = smov 3
  %v328 = vld [vmem:[%s326] ss:$16 sm:%s327]
  %s329 = scalar_lea.vmem %s0, 1
  %s330 = smov 12
  %v331 = vld [vmem:[%s329] ss:$16 sm:%s330]
  %vm332 = vcmask 1043458
  %v333 = vsel %vm332, %v331, %v328
  %s334 = scalar_lea.vmem %s0, 1
  %s335 = smov 48
  %v336 = vld [vmem:[%s334] ss:$16 sm:%s335]
  %vm337 = vcmask 1045508
  %v338 = vsel %vm337, %v336, %v333
  %s339 = scalar_lea.vmem %s0, 1
  %s340 = smov 192
  %v341 = vld [vmem:[%s339] ss:$16 sm:%s340]
  %vm342 = vcmask 1047558
  %v343 = vsel %vm342, %v341, %v338
  %344 = vrot.lane.b32.xlu0 %v343, 8
  %v345 = vpop.permute.xlu0 %344
  %vm346 = vcmask 130112
  %347 = vst.msk [vmem:[%s1] sm:$0xff] %vm346, %v345

// kernel: tile.48
$region0: #{tile.48}
  #allocation0 [shape = 's32[1]{0}', space=sflag, size = 0x4, scoped, tag = 'scoped memory for tile.48']
  %s0 = inlined_call_operand.vmem [shape: f32[8], index: 0, kind: input, shape index: {}]
  %s1 = inlined_call_operand.vmem [shape: f32[16,8], index: 1, kind: output, shape index: {}]
  // Predicated region
  $region2: #{tile.48} parent=0 // pred_check
    _
  $region3: #{tile.48} parent=0 // pred_check_branch
    %3 = sbr.rel (0) target = $region5
  $region4: #{tile.48} parent=0 // pred_region
    _
  $region5: #{tile.48} parent=0 // pred_fallthru
    _
  %v4 = vld [vmem:[%s0] ss:$0 sm:$0xff]
  %5 = vst [vmem:[%s1] sm:$0xff] %v4
  %s6 = scalar_lea.vmem %s1, 8
  %7 = vst [vmem:[%s6] sm:$0xff] %v4

// kernel: tile.65
$region0: #{tile.65}
  %s0 = inlined_call_operand.vmem [shape: f32[16,8], index: 0, kind: input, shape index: {}]
  %s1 = inlined_call_operand.vmem [shape: f32[1,128], index: 1, kind: output, shape index: {}]
  $region1: #{tile.65} parent=0
    #allocation0 [shape = 'u8[4096]{0}', space=vmem, size = 0x1000, scoped, tag = 'scoped mem for output reshape']
    %v2 = vld [vmem:[%s0] sm:$0x1]
    %vm3 = vcmask 64512
    %4 = vst.msk [vmem:[#allocation0] sm:$0x1] %vm3, %v2
    %s5 = scalar_lea.vmem %s0, 15
    %v6 = vld [vmem:[%s5] sm:$0x1]
    %7 = vrot.lane.b32.xlu0 %v6, 120
    %v8 = vpop.permute.xlu0 %7
    %vm9 = vcmask 1048512
    %10 = vst.msk [vmem:[#allocation0] sm:$0x1] %vm9, %v8
    %s11 = scalar_lea.vmem %s0, 14
    %v12 = vld [vmem:[%s11] sm:$0x1]
    %13 = vrot.lane.b32.xlu0 %v12, 112
    %v14 = vpop.permute.xlu0 %13
    %vm15 = vcmask 982912
    %16 = vst.msk [vmem:[#allocation0] sm:$0x1] %vm15, %v14
    %s17 = scalar_lea.vmem %s0, 13
    %v18 = vld [vmem:[%s17] sm:$0x1]
    %19 = vrot.lane.b32.xlu0 %v18, 104
    %v20 = vpop.permute.xlu0 %19
    %vm21 = vcmask 917312
    %22 = vst.msk [vmem:[#allocation0] sm:$0x1] %vm21, %v20
    %s23 = scalar_lea.vmem %s0, 12
    %v24 = vld [vmem:[%s23] sm:$0x1]
    %25 = vrot.lane.b32.xlu0 %v24, 96
    %v26 = vpop.permute.xlu0 %25
    %vm27 = vcmask 851712
    %28 = vst.msk [vmem:[#allocation0] sm:$0x1] %vm27, %v26
    %s29 = scalar_lea.vmem %s0, 11
    %v30 = vld [vmem:[%s29] sm:$0x1]
    %31 = vrot.lane.b32.xlu0 %v30, 88
    %v32 = vpop.permute.xlu0 %31
    %vm33 = vcmask 786112
    %34 = vst.msk [vmem:[#allocation0] sm:$0x1] %vm33, %v32
    %s35 = scalar_lea.vmem %s0, 10
    %v36 = vld [vmem:[%s35] sm:$0x1]
    %37 = vrot.lane.b32.xlu0 %v36, 80
    %v38 = vpop.permute.xlu0 %37
    %vm39 = vcmask 720512
    %40 = vst.msk [vmem:[#allocation0] sm:$0x1] %vm39, %v38
    %s41 = scalar_lea.vmem %s0, 9
    %v42 = vld [vmem:[%s41] sm:$0x1]
    %43 = vrot.lane.b32.xlu0 %v42, 72
    %v44 = vpop.permute.xlu0 %43
    %vm45 = vcmask 654912
    %46 = vst.msk [vmem:[#allocation0] sm:$0x1] %vm45, %v44
    %s47 = scalar_lea.vmem %s0, 8
    %v48 = vld [vmem:[%s47] sm:$0x1]
    %49 = vrot.lane.b32.xlu0 %v48, 64
    %v50 = vpop.permute.xlu0 %49
    %vm51 = vcmask 589312
    %52 = vst.msk [vmem:[#allocation0] sm:$0x1] %vm51, %v50
    %s53 = scalar_lea.vmem %s0, 7
    %v54 = vld [vmem:[%s53] sm:$0x1]
    %55 = vrot.lane.b32.xlu0 %v54, 56
    %v56 = vpop.permute.xlu0 %55
    %vm57 = vcmask 523712
    %58 = vst.msk [vmem:[#allocation0] sm:$0x1] %vm57, %v56
    %s59 = scalar_lea.vmem %s0, 6
    %v60 = vld [vmem:[%s59] sm:$0x1]
    %61 = vrot.lane.b32.xlu0 %v60, 48
    %v62 = vpop.permute.xlu0 %61
    %vm63 = vcmask 458112
    %64 = vst.msk [vmem:[#allocation0] sm:$0x1] %vm63, %v62
    %s65 = scalar_lea.vmem %s0, 5
    %v66 = vld [vmem:[%s65] sm:$0x1]
    %67 = vrot.lane.b32.xlu0 %v66, 40
    %v68 = vpop.permute.xlu0 %67
    %vm69 = vcmask 392512
    %70 = vst.msk [vmem:[#allocation0] sm:$0x1] %vm69, %v68
    %s71 = scalar_lea.vmem %s0, 4
    %v72 = vld [vmem:[%s71] sm:$0x1]
    %73 = vrot.lane.b32.xlu0 %v72, 32
    %v74 = vpop.permute.xlu0 %73
    %vm75 = vcmask 326912
    %76 = vst.msk [vmem:[#allocation0] sm:$0x1] %vm75, %v74
    %s77 = scalar_lea.vmem %s0, 3
    %v78 = vld [vmem:[%s77] sm:$0x1]
    %79 = vrot.lane.b32.xlu0 %v78, 24
    %v80 = vpop.permute.xlu0 %79
    %vm81 = vcmask 261312
    %82 = vst.msk [vmem:[#allocation0] sm:$0x1] %vm81, %v80
    %s83 = scalar_lea.vmem %s0, 2
    %v84 = vld [vmem:[%s83] sm:$0x1]
    %85 = vrot.lane.b32.xlu0 %v84, 16
    %v86 = vpop.permute.xlu0 %85
    %vm87 = vcmask 195712
    %88 = vst.msk [vmem:[#allocation0] sm:$0x1] %vm87, %v86
    %s89 = scalar_lea.vmem %s0, 1
    %v90 = vld [vmem:[%s89] sm:$0x1]
    %91 = vrot.lane.b32.xlu0 %v90, 8
    %v92 = vpop.permute.xlu0 %91
    %vm93 = vcmask 130112
    %94 = vst.msk [vmem:[#allocation0] sm:$0x1] %vm93, %v92
    %s96 = sshll.u32 1, 1
    %s97 = ssub.s32 %s96, 1
    %v99 = vld [vmem:[#allocation0] sm:%s97]
    %s100 = sshll.u32 1, 1
    %s101 = ssub.s32 %s100, 1
    %102 = vst [vmem:[%s1] sm:%s101] %v99

// kernel: basic_block_forward.1
$region0: #{basic_block_forward.1}
  #allocation0 [shape = 'u32[]', space=smem, size = 0x4, offset = 0x4, fixed_abs, tag = 'smem constant byte address 0x4 - core index']
  #allocation1 [shape = 'u32[144,128]{1,0:T(1,128)}', space=vmem, size = 0x12000, scoped, tag = 'internal scratch']
  %s0 = inlined_call_operand.vmem [shape: f32[128,128], index: 0, kind: input, shape index: {}, may-alias: {0,6}]
  %s1 = inlined_call_operand.vmem [shape: f32[128,8], index: 1, kind: input, shape index: {}]
  %s2 = inlined_call_operand.vmem [shape: f32[8,128], index: 2, kind: input, shape index: {}]
  %s3 = inlined_call_operand.vmem [shape: f32[5,128], index: 3, kind: input, shape index: {}]
  %s4 = inlined_call_operand.vmem [shape: f32[128,384], index: 4, kind: input, shape index: {}]
  %s5 = inlined_call_operand.vmem [shape: f32[128,384], index: 5, kind: input, shape index: {}]
  %s6 = inlined_call_operand.vmem [shape: f32[128,128], index: 6, kind: output, shape index: {}, may-alias: {0,6}]
  %s7 = sld [smem:[#allocation0]]
  $region34: #{basic_block_forward.1} parent=0
    _
  %s9 = ssub.s32 1, %s7
  %s10 = scalar_select 0, %s9, %s7
  // Predicated region
  $region2: #{basic_block_forward.1} parent=0 // pred_check
    _
  $region3: #{basic_block_forward.1} parent=0 // pred_check_branch
    %12 = sbr.rel (0) target = $region5
  $region4: #{basic_block_forward.1} parent=0 // pred_region
    _
  $region5: #{basic_block_forward.1} parent=0 // pred_fallthru
    _
  // Predicated region
  $region6: #{basic_block_forward.1} parent=0 // pred_check
    _
  $region7: #{basic_block_forward.1} parent=0 // pred_check_branch
    %14 = sbr.rel (0) target = $region9
  $region8: #{basic_block_forward.1} parent=0 // pred_region
    _
  $region9: #{basic_block_forward.1} parent=0 // pred_fallthru
    _
  // Predicated region
  $region10: #{basic_block_forward.1} parent=0 // pred_check
    _
  $region11: #{basic_block_forward.1} parent=0 // pred_check_branch
    %16 = sbr.rel (0) target = $region13
  $region12: #{basic_block_forward.1} parent=0 // pred_region
    _
  $region13: #{basic_block_forward.1} parent=0 // pred_fallthru
    _
  // Predicated region
  $region14: #{basic_block_forward.1} parent=0 // pred_check
    _
  $region15: #{basic_block_forward.1} parent=0 // pred_check_branch
    %18 = sbr.rel (0) target = $region17
  $region16: #{basic_block_forward.1} parent=0 // pred_region
    _
  $region17: #{basic_block_forward.1} parent=0 // pred_fallthru
    _
  // Predicated region
  $region18: #{basic_block_forward.1} parent=0 // pred_check
    _
  $region19: #{basic_block_forward.1} parent=0 // pred_check_branch
    %20 = sbr.rel (0) target = $region21
  $region20: #{basic_block_forward.1} parent=0 // pred_region
    _
  $region21: #{basic_block_forward.1} parent=0 // pred_fallthru
    _
  // Predicated region
  $region22: #{basic_block_forward.1} parent=0 // pred_check
    _
  $region23: #{basic_block_forward.1} parent=0 // pred_check_branch
    %22 = sbr.rel (0) target = $region25
  $region24: #{basic_block_forward.1} parent=0 // pred_region
    _
  $region25: #{basic_block_forward.1} parent=0 // pred_fallthru
    _
  %v23 = vld [vmem:[%s0] sm:$0xff]
  %v24 = vld [vmem:[%s0 + $0x8] sm:$0xff]
  %v25 = vld [vmem:[%s0 + $0x10] sm:$0xff]
  %v26 = vld [vmem:[%s0 + $0x18] sm:$0xff]
  %v27 = vld [vmem:[%s0 + $0x20] sm:$0xff]
  %v28 = vld [vmem:[%s0 + $0x28] sm:$0xff]
  %v29 = vld [vmem:[%s0 + $0x30] sm:$0xff]
  %v30 = vld [vmem:[%s0 + $0x38] sm:$0xff]
  %v31 = vld [vmem:[%s0 + $0x40] sm:$0xff]
  %v32 = vld [vmem:[%s0 + $0x48] sm:$0xff]
  %v33 = vld [vmem:[%s0 + $0x50] sm:$0xff]
  %v34 = vld [vmem:[%s0 + $0x58] sm:$0xff]
  %v35 = vld [vmem:[%s0 + $0x60] sm:$0xff]
  %v36 = vld [vmem:[%s0 + $0x68] sm:$0xff]
  %v37 = vld [vmem:[%s0 + $0x70] sm:$0xff]
  %v38 = vld [vmem:[%s0 + $0x78] sm:$0xff]
  %v39 = vld [vmem:[%s1] sm:$0xff]
  %v40 = vld [vmem:[%s1 + $0x8] sm:$0xff]
  %v41 = vld [vmem:[%s1 + $0x10] sm:$0xff]
  %v42 = vld [vmem:[%s1 + $0x18] sm:$0xff]
  %v43 = vld [vmem:[%s1 + $0x20] sm:$0xff]
  %v44 = vld [vmem:[%s1 + $0x28] sm:$0xff]
  %v45 = vld [vmem:[%s1 + $0x30] sm:$0xff]
  %v46 = vld [vmem:[%s1 + $0x38] sm:$0xff]
  %v47 = vld [vmem:[%s1 + $0x40] sm:$0xff]
  %v48 = vld [vmem:[%s1 + $0x48] sm:$0xff]
  %v49 = vld [vmem:[%s1 + $0x50] sm:$0xff]
  %v50 = vld [vmem:[%s1 + $0x58] sm:$0xff]
  %v51 = vld [vmem:[%s1 + $0x60] sm:$0xff]
  %v52 = vld [vmem:[%s1 + $0x68] sm:$0xff]
  %v53 = vld [vmem:[%s1 + $0x70] sm:$0xff]
  %v54 = vld [vmem:[%s1 + $0x78] sm:$0xff]
  %v55 = vld [vmem:[%s2] sm:$0xff]
  %v56 = vld [vmem:[%s3] sm:$0x1]
  %v57 = vld [vmem:[%s3 + $0x1] sm:$0x1]
  %v58 = vld [vmem:[%s3 + $0x2] sm:$0x1]
  %v59 = vld [vmem:[%s3 + $0x3] sm:$0x1]
  %v60 = vld [vmem:[%s3 + $0x4] sm:$0x1]
  %v61 = vlaneseq
  %v62 = vshrl.u32 %v61, 7
  %v63 = vadd.s32 %v62, 8
  %v64 = vadd.s32 %v62, 16
  %v65 = vadd.s32 %v62, 24
  %v66 = vadd.s32 %v62, 32
  %v67 = vadd.s32 %v62, 40
  %v68 = vadd.s32 %v62, 48
  %v69 = vadd.s32 %v62, 56
  %v70 = vadd.s32 %v62, 64
  %v71 = vadd.s32 %v62, 72
  %v72 = vadd.s32 %v62, 80
  %v73 = vadd.s32 %v62, 88
  %v74 = vadd.s32 %v62, 96
  %v75 = vadd.s32 %v62, 104
  %v76 = vadd.s32 %v62, 112
  %v77 = vadd.s32 %v62, 120
  %v78 = vand.u32 %v62, 15
  %v79 = vand.u32 %v63, 15
  %v80 = vand.u32 %v64, 15
  %v81 = vand.u32 %v65, 15
  %v82 = vand.u32 %v66, 15
  %v83 = vand.u32 %v67, 15
  %v84 = vand.u32 %v68, 15
  %v85 = vand.u32 %v69, 15
  %v86 = vand.u32 %v70, 15
  %v87 = vand.u32 %v71, 15
  %v88 = vand.u32 %v72, 15
  %v89 = vand.u32 %v73, 15
  %v90 = vand.u32 %v74, 15
  %v91 = vand.u32 %v75, 15
  %v92 = vand.u32 %v76, 15
  %v93 = vand.u32 %v77, 15
  %vm94 = vcmp.gt.s32.totalorder %v78, 0
  %vm95 = vcmp.gt.s32.totalorder %v79, 0
  %vm96 = vcmp.gt.s32.totalorder %v80, 0
  %vm97 = vcmp.gt.s32.totalorder %v81, 0
  %vm98 = vcmp.gt.s32.totalorder %v82, 0
  %vm99 = vcmp.gt.s32.totalorder %v83, 0
  %vm100 = vcmp.gt.s32.totalorder %v84, 0
  %vm101 = vcmp.gt.s32.totalorder %v85, 0
  %vm102 = vcmp.gt.s32.totalorder %v86, 0
  %vm103 = vcmp.gt.s32.totalorder %v87, 0
  %vm104 = vcmp.gt.s32.totalorder %v88, 0
  %vm105 = vcmp.gt.s32.totalorder %v89, 0
  %vm106 = vcmp.gt.s32.totalorder %v90, 0
  %vm107 = vcmp.gt.s32.totalorder %v91, 0
  %vm108 = vcmp.gt.s32.totalorder %v92, 0
  %vm109 = vcmp.gt.s32.totalorder %v93, 0
  %v110 = vsel %vm94, 1, 0
  %v111 = vsel %vm95, 1, 0
  %v112 = vsel %vm96, 1, 0
  %v113 = vsel %vm97, 1, 0
  %v114 = vsel %vm98, 1, 0
  %v115 = vsel %vm99, 1, 0
  %v116 = vsel %vm100, 1, 0
  %v117 = vsel %vm101, 1, 0
  %v118 = vsel %vm102, 1, 0
  %v119 = vsel %vm103, 1, 0
  %v120 = vsel %vm104, 1, 0
  %v121 = vsel %vm105, 1, 0
  %v122 = vsel %vm106, 1, 0
  %v123 = vsel %vm107, 1, 0
  %v124 = vsel %vm108, 1, 0
  %v125 = vsel %vm109, 1, 0
  %v126 = vcvt.s32.f32 %v110
  %v127 = vcvt.s32.f32 %v111
  %v128 = vcvt.s32.f32 %v112
  %v129 = vcvt.s32.f32 %v113
  %v130 = vcvt.s32.f32 %v114
  %v131 = vcvt.s32.f32 %v115
  %v132 = vcvt.s32.f32 %v116
  %v133 = vcvt.s32.f32 %v117
  %v134 = vcvt.s32.f32 %v118
  %v135 = vcvt.s32.f32 %v119
  %v136 = vcvt.s32.f32 %v120
  %v137 = vcvt.s32.f32 %v121
  %v138 = vcvt.s32.f32 %v122
  %v139 = vcvt.s32.f32 %v123
  %v140 = vcvt.s32.f32 %v124
  %v141 = vcvt.s32.f32 %v125
  %vm142 = vcmp.lt.s32.totalorder %v78, 15
  %vm143 = vcmp.lt.s32.totalorder %v79, 15
  %vm144 = vcmp.lt.s32.totalorder %v80, 15
  %vm145 = vcmp.lt.s32.totalorder %v81, 15
  %vm146 = vcmp.lt.s32.totalorder %v82, 15
  %vm147 = vcmp.lt.s32.totalorder %v83, 15
  %vm148 = vcmp.lt.s32.totalorder %v84, 15
  %vm149 = vcmp.lt.s32.totalorder %v85, 15
  %vm150 = vcmp.lt.s32.totalorder %v86, 15
  %vm151 = vcmp.lt.s32.totalorder %v87, 15
  %vm152 = vcmp.lt.s32.totalorder %v88, 15
  %vm153 = vcmp.lt.s32.totalorder %v89, 15
  %vm154 = vcmp.lt.s32.totalorder %v90, 15
  %vm155 = vcmp.lt.s32.totalorder %v91, 15
  %vm156 = vcmp.lt.s32.totalorder %v92, 15
  %vm157 = vcmp.lt.s32.totalorder %v93, 15
  %v158 = vsel %vm142, 1, 0
  %v159 = vsel %vm143, 1, 0
  %v160 = vsel %vm144, 1, 0
  %v161 = vsel %vm145, 1, 0
  %v162 = vsel %vm146, 1, 0
  %v163 = vsel %vm147, 1, 0
  %v164 = vsel %vm148, 1, 0
  %v165 = vsel %vm149, 1, 0
  %v166 = vsel %vm150, 1, 0
  %v167 = vsel %vm151, 1, 0
  %v168 = vsel %vm152, 1, 0
  %v169 = vsel %vm153, 1, 0
  %v170 = vsel %vm154, 1, 0
  %v171 = vsel %vm155, 1, 0
  %v172 = vsel %vm156, 1, 0
  %v173 = vsel %vm157, 1, 0
  %v174 = vcvt.s32.f32 %v158
  %v175 = vcvt.s32.f32 %v159
  %v176 = vcvt.s32.f32 %v160
  %v177 = vcvt.s32.f32 %v161
  %v178 = vcvt.s32.f32 %v162
  %v179 = vcvt.s32.f32 %v163
  %v180 = vcvt.s32.f32 %v164
  %v181 = vcvt.s32.f32 %v165
  %v182 = vcvt.s32.f32 %v166
  %v183 = vcvt.s32.f32 %v167
  %v184 = vcvt.s32.f32 %v168
  %v185 = vcvt.s32.f32 %v169
  %v186 = vcvt.s32.f32 %v170
  %v187 = vcvt.s32.f32 %v171
  %v188 = vcvt.s32.f32 %v172
  %v189 = vcvt.s32.f32 %v173
  %v190 = vadd.f32 %v23, %v24
  %v191 = vadd.f32 %v190, %v25
  %v192 = vadd.f32 %v191, %v26
  %v193 = vadd.f32 %v192, %v27
  %v194 = vadd.f32 %v193, %v28
  %v195 = vadd.f32 %v194, %v29
  %v196 = vadd.f32 %v195, %v30
  %v197 = vadd.f32 %v196, %v31
  %v198 = vadd.f32 %v197, %v32
  %v199 = vadd.f32 %v198, %v33
  %v200 = vadd.f32 %v199, %v34
  %v201 = vadd.f32 %v200, %v35
  %v202 = vadd.f32 %v201, %v36
  %v203 = vadd.f32 %v202, %v37
  %v204 = vadd.f32 %v203, %v38
  %v205 = vrot.slane %v204, 4
  %v206 = vadd.f32 %v204, %v205
  %v207 = vrot.slane %v206, 2
  %v208 = vadd.f32 %v206, %v207
  %v209 = vrot.slane %v208, 1
  %v210 = vadd.f32 %v208, %v209
  %v211 = vmul.f32 %v23, %v23
  %v212 = vmul.f32 %v24, %v24
  %v213 = vmul.f32 %v25, %v25
  %v214 = vmul.f32 %v26, %v26
  %v215 = vmul.f32 %v27, %v27
  %v216 = vmul.f32 %v28, %v28
  %v217 = vmul.f32 %v29, %v29
  %v218 = vmul.f32 %v30, %v30
  %v219 = vmul.f32 %v31, %v31
  %v220 = vmul.f32 %v32, %v32
  %v221 = vmul.f32 %v33, %v33
  %v222 = vmul.f32 %v34, %v34
  %v223 = vmul.f32 %v35, %v35
  %v224 = vmul.f32 %v36, %v36
  %v225 = vmul.f32 %v37, %v37
  %v226 = vmul.f32 %v38, %v38
  %v227 = vadd.f32 %v211, %v212
  %v228 = vadd.f32 %v227, %v213
  %v229 = vadd.f32 %v228, %v214
  %v230 = vadd.f32 %v229, %v215
  %v231 = vadd.f32 %v230, %v216
  %v232 = vadd.f32 %v231, %v217
  %v233 = vadd.f32 %v232, %v218
  %v234 = vadd.f32 %v233, %v219
  %v235 = vadd.f32 %v234, %v220
  %v236 = vadd.f32 %v235, %v221
  %v237 = vadd.f32 %v236, %v222
  %v238 = vadd.f32 %v237, %v223
  %v239 = vadd.f32 %v238, %v224
  %v240 = vadd.f32 %v239, %v225
  %v241 = vadd.f32 %v240, %v226
  %v242 = vrot.slane %v241, 4
  %v243 = vadd.f32 %v241, %v242
  %v244 = vrot.slane %v243, 2
  %v245 = vadd.f32 %v243, %v244
  %v246 = vrot.slane %v245, 1
  %v247 = vadd.f32 %v245, %v246
  %vm248 = vcmask 1040384
  %v249 = vsel %vm248, %v210, %v247
  %250 = vmatprep.subr.mxu0 0.0
  %251 = vmatpush1.msra.mxu0 %v54
  %252 = vmatprep.subr.mxu0 0.0
  %253 = vmatpush1.msra.mxu0 %v53
  %254 = vmatprep.subr.mxu0 0.0
  %255 = vmatpush1.msra.mxu0 %v52
  %256 = vmatprep.subr.mxu0 0.0
  %257 = vmatpush1.msra.mxu0 %v51
  %258 = vmatprep.subr.mxu0 0.0
  %259 = vmatpush1.msra.mxu0 %v50
  %260 = vmatprep.subr.mxu0 0.0
  %261 = vmatpush1.msra.mxu0 %v49
  %262 = vmatprep.subr.mxu0 0.0
  %263 = vmatpush1.msra.mxu0 %v48
  %264 = vmatprep.subr.mxu0 0.0
  %265 = vmatpush1.msra.mxu0 %v47
  %266 = vmatprep.subr.mxu0 0.0
  %267 = vmatpush1.msra.mxu0 %v46
  %268 = vmatprep.subr.mxu0 0.0
  %269 = vmatpush1.msra.mxu0 %v45
  %270 = vmatprep.subr.mxu0 0.0
  %271 = vmatpush1.msra.mxu0 %v44
  %272 = vmatprep.subr.mxu0 0.0
  %273 = vmatpush1.msra.mxu0 %v43
  %274 = vmatprep.subr.mxu0 0.0
  %275 = vmatpush1.msra.mxu0 %v42
  %276 = vmatprep.subr.mxu0 0.0
  %277 = vmatpush1.msra.mxu0 %v41
  %278 = vmatprep.subr.mxu0 0.0
  %279 = vmatpush1.msra.mxu0 %v40
  %280 = vmatprep.subr.mxu0 0.0
  %281 = vmatpush1.msra.mxu0 %v39
  %282 = vmatprep.subr.mxu0 0.0
  %283 = vmatpush2.msra.mxu0 0.0
  %284 = vmatprep.subr.mxu0 0.0
  %285 = vmatpush2.msra.mxu0 0.0
  %286 = vmatprep.subr.mxu0 0.0
  %287 = vmatpush2.msra.mxu0 0.0
  %288 = vmatprep.subr.mxu0 0.0
  %289 = vmatpush2.msra.mxu0 0.0
  %290 = vmatprep.subr.mxu0 0.0
  %291 = vmatpush2.msra.mxu0 0.0
  %292 = vmatprep.subr.mxu0 0.0
  %293 = vmatpush2.msra.mxu0 0.0
  %294 = vmatprep.subr.mxu0 0.0
  %295 = vmatpush2.msra.mxu0 0.0
  %296 = vmatprep.subr.mxu0 0.0
  %297 = vmatpush2.msra.mxu0 0.0
  %298 = vmatprep.subr.mxu0 0.0
  %299 = vmatpush2.msra.mxu0 0.0
  %300 = vmatprep.subr.mxu0 0.0
  %301 = vmatpush2.msra.mxu0 0.0
  %302 = vmatprep.subr.mxu0 0.0
  %303 = vmatpush2.msra.mxu0 0.0
  %304 = vmatprep.subr.mxu0 0.0
  %305 = vmatpush2.msra.mxu0 0.0
  %306 = vmatprep.subr.mxu0 0.0
  %307 = vmatpush2.msra.mxu0 0.0
  %308 = vmatprep.subr.mxu0 0.0
  %309 = vmatpush2.msra.mxu0 0.0
  %310 = vmatprep.subr.mxu0 0.0
  %311 = vmatpush2.msra.mxu0 0.0
  %312 = vmatprep.subr.mxu0 0.0
  %313 = vmatpush2.msra.mxu0 0.0
  %314 = vmatprep.mubr.f32.mxu0 0.0
  %315 = vmatmul.mubr.f32.gmra.mxu0 %v249
  %v316 = vpop.f32.mrf.mxu0
  %v317 = vadd.f32 0.0, %v316
  %v318 = vpop.f32.mrf.mxu0
  %319 = vdwg.mxu0
  %vm320 = vcmask 64512
  %v322 = vsel %vm320, %v317, 0
  %324 = vmatprep.subr.mxu0 0.0
  %325 = vmatpush1.msra.mxu0 0.0
  %326 = vmatprep.subr.mxu0 0.0
  %327 = vmatpush1.msra.mxu0 0.0
  %328 = vmatprep.subr.mxu0 0.0
  %329 = vmatpush1.msra.mxu0 0.0
  %330 = vmatprep.subr.mxu0 0.0
  %331 = vmatpush1.msra.mxu0 0.0
  %332 = vmatprep.subr.mxu0 0.0
  %333 = vmatpush1.msra.mxu0 0.0
  %334 = vmatprep.subr.mxu0 0.0
  %335 = vmatpush1.msra.mxu0 0.0
  %336 = vmatprep.subr.mxu0 0.0
  %337 = vmatpush1.msra.mxu0 0.0
  %338 = vmatprep.subr.mxu0 0.0
  %339 = vmatpush1.msra.mxu0 0.0
  %340 = vmatprep.subr.mxu0 0.0
  %341 = vmatpush1.msra.mxu0 0.0
  %342 = vmatprep.subr.mxu0 0.0
  %343 = vmatpush1.msra.mxu0 0.0
  %344 = vmatprep.subr.mxu0 0.0
  %345 = vmatpush1.msra.mxu0 0.0
  %346 = vmatprep.subr.mxu0 0.0
  %347 = vmatpush1.msra.mxu0 0.0
  %348 = vmatprep.subr.mxu0 0.0
  %349 = vmatpush1.msra.mxu0 0.0
  %350 = vmatprep.subr.mxu0 0.0
  %351 = vmatpush1.msra.mxu0 0.0
  %352 = vmatprep.subr.mxu0 0.0
  %353 = vmatpush1.msra.mxu0 0.0
  %354 = vmatprep.subr.mxu0 0.0
  %355 = vmatpush1.msra.mxu0 %v55
  %356 = vmatprep.subr.mxu0 0.0
  %357 = vmatpush2.msra.mxu0 0.0
  %358 = vmatprep.subr.mxu0 0.0
  %359 = vmatpush2.msra.mxu0 0.0
  %360 = vmatprep.subr.mxu0 0.0
  %361 = vmatpush2.msra.mxu0 0.0
  %362 = vmatprep.subr.mxu0 0.0
  %363 = vmatpush2.msra.mxu0 0.0
  %364 = vmatprep.subr.mxu0 0.0
  %365 = vmatpush2.msra.mxu0 0.0
  %366 = vmatprep.subr.mxu0 0.0
  %367 = vmatpush2.msra.mxu0 0.0
  %368 = vmatprep.subr.mxu0 0.0
  %369 = vmatpush2.msra.mxu0 0.0
  %370 = vmatprep.subr.mxu0 0.0
  %371 = vmatpush2.msra.mxu0 0.0
  %372 = vmatprep.subr.mxu0 0.0
  %373 = vmatpush2.msra.mxu0 0.0
  %374 = vmatprep.subr.mxu0 0.0
  %375 = vmatpush2.msra.mxu0 0.0
  %376 = vmatprep.subr.mxu0 0.0
  %377 = vmatpush2.msra.mxu0 0.0
  %378 = vmatprep.subr.mxu0 0.0
  %379 = vmatpush2.msra.mxu0 0.0
  %380 = vmatprep.subr.mxu0 0.0
  %381 = vmatpush2.msra.mxu0 0.0
  %382 = vmatprep.subr.mxu0 0.0
  %383 = vmatpush2.msra.mxu0 0.0
  %384 = vmatprep.subr.mxu0 0.0
  %385 = vmatpush2.msra.mxu0 0.0
  %386 = vmatprep.subr.mxu0 0.0
  %387 = vmatpush2.msra.mxu0 0.0
  %388 = vmatprep.mubr.f32.mxu0 0.0
  %389 = vmatmul.mubr.f32.gmra.mxu0 %v322
  %v390 = vpop.f32.mrf.mxu0
  %v391 = vadd.f32 0.0, %v390
  %v392 = vpop.f32.mrf.mxu0
  %393 = vdwg.mxu0
  %v394 = vmul.f32 %v391, %v391
  %v396 = vrot.slane %v394, 7
  %v398 = vsub.f32 %v391, %v396
  %v399 = vadd.f32 %v398, 1e-05
  %v400 = vrsqrt.pop %v399
  %v402 = vrot.slane %v400, 1
  %v404 = vmul.f32 %v56, %v402
  %v405 = vmul.f32 %v391, %v404
  %v406 = vsub.f32 %v57, %v405
  %v407 = vlaneseq
  %v408 = vshrl.u32 %v407, 7
  %v409 = vsub.s32 0, %v408
  %v410 = vrot.slane %v404, %v409
  %v411 = vmul.f32 %v23, %v410
  %v412 = vmul.f32 %v24, %v410
  %v413 = vmul.f32 %v25, %v410
  %v414 = vmul.f32 %v26, %v410
  %v415 = vmul.f32 %v27, %v410
  %v416 = vmul.f32 %v28, %v410
  %v417 = vmul.f32 %v29, %v410
  %v418 = vmul.f32 %v30, %v410
  %v419 = vmul.f32 %v31, %v410
  %v420 = vmul.f32 %v32, %v410
  %v421 = vmul.f32 %v33, %v410
  %v422 = vmul.f32 %v34, %v410
  %v423 = vmul.f32 %v35, %v410
  %v424 = vmul.f32 %v36, %v410
  %v425 = vmul.f32 %v37, %v410
  %v426 = vmul.f32 %v38, %v410
  %v427 = vlaneseq
  %v428 = vshrl.u32 %v427, 7
  %v429 = vsub.s32 0, %v428
  %v430 = vrot.slane %v406, %v429
  %v431 = vadd.f32 %v411, %v430
  %v432 = vadd.f32 %v412, %v430
  %v433 = vadd.f32 %v413, %v430
  %v434 = vadd.f32 %v414, %v430
  %v435 = vadd.f32 %v415, %v430
  %v436 = vadd.f32 %v416, %v430
  %v437 = vadd.f32 %v417, %v430
  %v438 = vadd.f32 %v418, %v430
  %v439 = vadd.f32 %v419, %v430
  %v440 = vadd.f32 %v420, %v430
  %v441 = vadd.f32 %v421, %v430
  %v442 = vadd.f32 %v422, %v430
  %v443 = vadd.f32 %v423, %v430
  %v444 = vadd.f32 %v424, %v430
  %v445 = vadd.f32 %v425, %v430
  %v446 = vadd.f32 %v426, %v430
  %v447 = vmax.f32 %v431, 0.0
  %v448 = vmax.f32 %v432, 0.0
  %v449 = vmax.f32 %v433, 0.0
  %v450 = vmax.f32 %v434, 0.0
  %v451 = vmax.f32 %v435, 0.0
  %v452 = vmax.f32 %v436, 0.0
  %v453 = vmax.f32 %v437, 0.0
  %v454 = vmax.f32 %v438, 0.0
  %v455 = vmax.f32 %v439, 0.0
  %v456 = vmax.f32 %v440, 0.0
  %v457 = vmax.f32 %v441, 0.0
  %v458 = vmax.f32 %v442, 0.0
  %v459 = vmax.f32 %v443, 0.0
  %v460 = vmax.f32 %v444, 0.0
  %v461 = vmax.f32 %v445, 0.0
  %v462 = vmax.f32 %v446, 0.0
  %v463 = vld [vmem:[%s4] sm:$0xff]
  %v464 = vld [vmem:[%s4 + $0x8] sm:$0xff]
  %v465 = vld [vmem:[%s4 + $0x10] sm:$0xff]
  %v466 = vld [vmem:[%s4 + $0x18] sm:$0xff]
  %v467 = vld [vmem:[%s4 + $0x20] sm:$0xff]
  %v468 = vld [vmem:[%s4 + $0x28] sm:$0xff]
  %v469 = vld [vmem:[%s4 + $0x30] sm:$0xff]
  %v470 = vld [vmem:[%s4 + $0x38] sm:$0xff]
  %v471 = vld [vmem:[%s4 + $0x40] sm:$0xff]
  %v472 = vld [vmem:[%s4 + $0x48] sm:$0xff]
  %v473 = vld [vmem:[%s4 + $0x50] sm:$0xff]
  %v474 = vld [vmem:[%s4 + $0x58] sm:$0xff]
  %v475 = vld [vmem:[%s4 + $0x60] sm:$0xff]
  %v476 = vld [vmem:[%s4 + $0x68] sm:$0xff]
  %v477 = vld [vmem:[%s4 + $0x70] sm:$0xff]
  %v478 = vld [vmem:[%s4 + $0x78] sm:$0xff]
  %v479 = vld [vmem:[%s4 + $0x80] sm:$0xff]
  %v480 = vld [vmem:[%s4 + $0x88] sm:$0xff]
  %v481 = vld [vmem:[%s4 + $0x90] sm:$0xff]
  %v482 = vld [vmem:[%s4 + $0x98] sm:$0xff]
  %v483 = vld [vmem:[%s4 + $0xa0] sm:$0xff]
  %v484 = vld [vmem:[%s4 + $0xa8] sm:$0xff]
  %v485 = vld [vmem:[%s4 + $0xb0] sm:$0xff]
  %v486 = vld [vmem:[%s4 + $0xb8] sm:$0xff]
  %v487 = vld [vmem:[%s4 + $0xc0] sm:$0xff]
  %v488 = vld [vmem:[%s4 + $0xc8] sm:$0xff]
  %v489 = vld [vmem:[%s4 + $0xd0] sm:$0xff]
  %v490 = vld [vmem:[%s4 + $0xd8] sm:$0xff]
  %v491 = vld [vmem:[%s4 + $0xe0] sm:$0xff]
  %v492 = vld [vmem:[%s4 + $0xe8] sm:$0xff]
  %v493 = vld [vmem:[%s4 + $0xf0] sm:$0xff]
  %v494 = vld [vmem:[%s4 + $0xf8] sm:$0xff]
  %v495 = vld [vmem:[%s4 + $0x100] sm:$0xff]
  %v496 = vld [vmem:[%s4 + $0x108] sm:$0xff]
  %v497 = vld [vmem:[%s4 + $0x110] sm:$0xff]
  %v498 = vld [vmem:[%s4 + $0x118] sm:$0xff]
  %v499 = vld [vmem:[%s4 + $0x120] sm:$0xff]
  %v500 = vld [vmem:[%s4 + $0x128] sm:$0xff]
  %v501 = vld [vmem:[%s4 + $0x130] sm:$0xff]
  %v502 = vld [vmem:[%s4 + $0x138] sm:$0xff]
  %v503 = vld [vmem:[%s4 + $0x140] sm:$0xff]
  %v504 = vld [vmem:[%s4 + $0x148] sm:$0xff]
  %v505 = vld [vmem:[%s4 + $0x150] sm:$0xff]
  %v506 = vld [vmem:[%s4 + $0x158] sm:$0xff]
  %v507 = vld [vmem:[%s4 + $0x160] sm:$0xff]
  %v508 = vld [vmem:[%s4 + $0x168] sm:$0xff]
  %v509 = vld [vmem:[%s4 + $0x170] sm:$0xff]
  %v510 = vld [vmem:[%s4 + $0x178] sm:$0xff]
  %511 = vmatprep.subr.mxu0 %v509
  %512 = vmatpush1.msra.mxu0 %v508
  %513 = vmatprep.subr.mxu0 %v506
  %514 = vmatpush1.msra.mxu0 %v505
  %515 = vmatprep.subr.mxu0 %v503
  %516 = vmatpush1.msra.mxu0 %v502
  %517 = vmatprep.subr.mxu0 %v500
  %518 = vmatpush1.msra.mxu0 %v499
  %519 = vmatprep.subr.mxu0 %v497
  %520 = vmatpush1.msra.mxu0 %v496
  %521 = vmatprep.subr.mxu0 %v494
  %522 = vmatpush1.msra.mxu0 %v493
  %523 = vmatprep.subr.mxu0 %v491
  %524 = vmatpush1.msra.mxu0 %v490
  %525 = vmatprep.subr.mxu0 %v488
  %526 = vmatpush1.msra.mxu0 %v487
  %527 = vmatprep.subr.mxu0 %v485
  %528 = vmatpush1.msra.mxu0 %v484
  %529 = vmatprep.subr.mxu0 %v482
  %530 = vmatpush1.msra.mxu0 %v481
  %531 = vmatprep.subr.mxu0 %v479
  %532 = vmatpush1.msra.mxu0 %v478
  %533 = vmatprep.subr.mxu0 %v476
  %534 = vmatpush1.msra.mxu0 %v475
  %535 = vmatprep.subr.mxu0 %v473
  %536 = vmatpush1.msra.mxu0 %v472
  %537 = vmatprep.subr.mxu0 %v470
  %538 = vmatpush1.msra.mxu0 %v469
  %539 = vmatprep.subr.mxu0 %v467
  %540 = vmatpush1.msra.mxu0 %v466
  %541 = vmatprep.subr.mxu0 %v464
  %542 = vmatpush1.msra.mxu0 %v463
  %543 = vmatprep.subr.mxu0 0.0
  %544 = vmatpush2.msra.mxu0 0.0
  %545 = vmatprep.subr.mxu0 0.0
  %546 = vmatpush2.msra.mxu0 0.0
  %547 = vmatprep.subr.mxu0 0.0
  %548 = vmatpush2.msra.mxu0 0.0
  %549 = vmatprep.subr.mxu0 0.0
  %550 = vmatpush2.msra.mxu0 0.0
  %551 = vmatprep.subr.mxu0 0.0
  %552 = vmatpush2.msra.mxu0 0.0
  %553 = vmatprep.subr.mxu0 0.0
  %554 = vmatpush2.msra.mxu0 0.0
  %555 = vmatprep.subr.mxu0 0.0
  %556 = vmatpush2.msra.mxu0 0.0
  %557 = vmatprep.subr.mxu0 0.0
  %558 = vmatpush2.msra.mxu0 0.0
  %559 = vmatprep.subr.mxu0 0.0
  %560 = vmatpush2.msra.mxu0 0.0
  %561 = vmatprep.subr.mxu0 0.0
  %562 = vmatpush2.msra.mxu0 0.0
  %563 = vmatprep.subr.mxu0 0.0
  %564 = vmatpush2.msra.mxu0 0.0
  %565 = vmatprep.subr.mxu0 0.0
  %566 = vmatpush2.msra.mxu0 0.0
  %567 = vmatprep.subr.mxu0 0.0
  %568 = vmatpush2.msra.mxu0 0.0
  %569 = vmatprep.subr.mxu0 0.0
  %570 = vmatpush2.msra.mxu0 0.0
  %571 = vmatprep.subr.mxu0 0.0
  %572 = vmatpush2.msra.mxu0 0.0
  %573 = vmatprep.subr.mxu0 0.0
  %574 = vmatpush2.msra.mxu0 0.0
  %575 = vmatprep.mubr.f32.mxu0 0.0
  %576 = vmatmul.mubr.f32.gmra.mxu0 %v447
  %v577 = vpop.f32.mrf.mxu0
  %v578 = vadd.f32 0.0, %v577
  %v579 = vpop.f32.mrf.mxu0
  %v580 = vadd.f32 0.0, %v579
  %581 = vmatprep.mubr.f32.mxu0 0.0
  %582 = vmatmul.mubr.f32.gmra.mxu0 %v448
  %v583 = vpop.f32.mrf.mxu0
  %v584 = vadd.f32 0.0, %v583
  %v585 = vpop.f32.mrf.mxu0
  %v586 = vadd.f32 0.0, %v585
  %587 = vmatprep.mubr.f32.mxu0 0.0
  %588 = vmatmul.mubr.f32.gmra.mxu0 %v449
  %v589 = vpop.f32.mrf.mxu0
  %v590 = vadd.f32 0.0, %v589
  %v591 = vpop.f32.mrf.mxu0
  %v592 = vadd.f32 0.0, %v591
  %593 = vmatprep.mubr.f32.mxu0 0.0
  %594 = vmatmul.mubr.f32.gmra.mxu0 %v450
  %v595 = vpop.f32.mrf.mxu0
  %v596 = vadd.f32 0.0, %v595
  %v597 = vpop.f32.mrf.mxu0
  %v598 = vadd.f32 0.0, %v597
  %599 = vmatprep.mubr.f32.mxu0 0.0
  %600 = vmatmul.mubr.f32.gmra.mxu0 %v451
  %v601 = vpop.f32.mrf.mxu0
  %v602 = vadd.f32 0.0, %v601
  %v603 = vpop.f32.mrf.mxu0
  %v604 = vadd.f32 0.0, %v603
  %605 = vmatprep.mubr.f32.mxu0 0.0
  %606 = vmatmul.mubr.f32.gmra.mxu0 %v452
  %v607 = vpop.f32.mrf.mxu0
  %v608 = vadd.f32 0.0, %v607
  %v609 = vpop.f32.mrf.mxu0
  %v610 = vadd.f32 0.0, %v609
  %611 = vmatprep.mubr.f32.mxu0 0.0
  %612 = vmatmul.mubr.f32.gmra.mxu0 %v453
  %v613 = vpop.f32.mrf.mxu0
  %v614 = vadd.f32 0.0, %v613
  %v615 = vpop.f32.mrf.mxu0
  %v616 = vadd.f32 0.0, %v615
  %617 = vmatprep.mubr.f32.mxu0 0.0
  %618 = vmatmul.mubr.f32.gmra.mxu0 %v454
  %v619 = vpop.f32.mrf.mxu0
  %v620 = vadd.f32 0.0, %v619
  %v621 = vpop.f32.mrf.mxu0
  %v622 = vadd.f32 0.0, %v621
  %623 = vmatprep.mubr.f32.mxu0 0.0
  %624 = vmatmul.mubr.f32.gmra.mxu0 %v455
  %v625 = vpop.f32.mrf.mxu0
  %v626 = vadd.f32 0.0, %v625
  %v627 = vpop.f32.mrf.mxu0
  %v628 = vadd.f32 0.0, %v627
  %629 = vmatprep.mubr.f32.mxu0 0.0
  %630 = vmatmul.mubr.f32.gmra.mxu0 %v456
  %v631 = vpop.f32.mrf.mxu0
  %v632 = vadd.f32 0.0, %v631
  %v633 = vpop.f32.mrf.mxu0
  %v634 = vadd.f32 0.0, %v633
  %635 = vmatprep.mubr.f32.mxu0 0.0
  %636 = vmatmul.mubr.f32.gmra.mxu0 %v457
  %v637 = vpop.f32.mrf.mxu0
  %v638 = vadd.f32 0.0, %v637
  %v639 = vpop.f32.mrf.mxu0
  %v640 = vadd.f32 0.0, %v639
  %641 = vmatprep.mubr.f32.mxu0 0.0
  %642 = vmatmul.mubr.f32.gmra.mxu0 %v458
  %v643 = vpop.f32.mrf.mxu0
  %v644 = vadd.f32 0.0, %v643
  %v645 = vpop.f32.mrf.mxu0
  %v646 = vadd.f32 0.0, %v645
  %647 = vmatprep.mubr.f32.mxu0 0.0
  %648 = vmatmul.mubr.f32.gmra.mxu0 %v459
  %v649 = vpop.f32.mrf.mxu0
  %v650 = vadd.f32 0.0, %v649
  %v651 = vpop.f32.mrf.mxu0
  %v652 = vadd.f32 0.0, %v651
  %653 = vmatprep.mubr.f32.mxu0 0.0
  %654 = vmatmul.mubr.f32.gmra.mxu0 %v460
  %v655 = vpop.f32.mrf.mxu0
  %v656 = vadd.f32 0.0, %v655
  %v657 = vpop.f32.mrf.mxu0
  %v658 = vadd.f32 0.0, %v657
  %659 = vmatprep.mubr.f32.mxu0 0.0
  %660 = vmatmul.mubr.f32.gmra.mxu0 %v461
  %v661 = vpop.f32.mrf.mxu0
  %v662 = vadd.f32 0.0, %v661
  %v663 = vpop.f32.mrf.mxu0
  %v664 = vadd.f32 0.0, %v663
  %665 = vmatprep.mubr.f32.mxu0 0.0
  %666 = vmatmul.mubr.f32.gmra.mxu0 %v462
  %v667 = vpop.f32.mrf.mxu0
  %v668 = vadd.f32 0.0, %v667
  %v669 = vpop.f32.mrf.mxu0
  %v670 = vadd.f32 0.0, %v669
  %671 = vdwg.mxu0
  %672 = vmatprep.subr.mxu0 0.0
  %673 = vmatpush1.msra.mxu0 %v510
  %674 = vmatprep.subr.mxu0 0.0
  %675 = vmatpush1.msra.mxu0 %v507
  %676 = vmatprep.subr.mxu0 0.0
  %677 = vmatpush1.msra.mxu0 %v504
  %678 = vmatprep.subr.mxu0 0.0
  %679 = vmatpush1.msra.mxu0 %v501
  %680 = vmatprep.subr.mxu0 0.0
  %681 = vmatpush1.msra.mxu0 %v498
  %682 = vmatprep.subr.mxu0 0.0
  %683 = vmatpush1.msra.mxu0 %v495
  %684 = vmatprep.subr.mxu0 0.0
  %685 = vmatpush1.msra.mxu0 %v492
  %686 = vmatprep.subr.mxu0 0.0
  %687 = vmatpush1.msra.mxu0 %v489
  %688 = vmatprep.subr.mxu0 0.0
  %689 = vmatpush1.msra.mxu0 %v486
  %690 = vmatprep.subr.mxu0 0.0
  %691 = vmatpush1.msra.mxu0 %v483
  %692 = vmatprep.subr.mxu0 0.0
  %693 = vmatpush1.msra.mxu0 %v480
  %694 = vmatprep.subr.mxu0 0.0
  %695 = vmatpush1.msra.mxu0 %v477
  %696 = vmatprep.subr.mxu0 0.0
  %697 = vmatpush1.msra.mxu0 %v474
  %698 = vmatprep.subr.mxu0 0.0
  %699 = vmatpush1.msra.mxu0 %v471
  %700 = vmatprep.subr.mxu0 0.0
  %701 = vmatpush1.msra.mxu0 %v468
  %702 = vmatprep.subr.mxu0 0.0
  %703 = vmatpush1.msra.mxu0 %v465
  %704 = vmatprep.subr.mxu0 0.0
  %705 = vmatpush2.msra.mxu0 0.0
  %706 = vmatprep.subr.mxu0 0.0
  %707 = vmatpush2.msra.mxu0 0.0
  %708 = vmatprep.subr.mxu0 0.0
  %709 = vmatpush2.msra.mxu0 0.0
  %710 = vmatprep.subr.mxu0 0.0
  %711 = vmatpush2.msra.mxu0 0.0
  %712 = vmatprep.subr.mxu0 0.0
  %713 = vmatpush2.msra.mxu0 0.0
  %714 = vmatprep.subr.mxu0 0.0
  %715 = vmatpush2.msra.mxu0 0.0
  %716 = vmatprep.subr.mxu0 0.0
  %717 = vmatpush2.msra.mxu0 0.0
  %718 = vmatprep.subr.mxu0 0.0
  %719 = vmatpush2.msra.mxu0 0.0
  %720 = vmatprep.subr.mxu0 0.0
  %721 = vmatpush2.msra.mxu0 0.0
  %722 = vmatprep.subr.mxu0 0.0
  %723 = vmatpush2.msra.mxu0 0.0
  %724 = vmatprep.subr.mxu0 0.0
  %725 = vmatpush2.msra.mxu0 0.0
  %726 = vmatprep.subr.mxu0 0.0
  %727 = vmatpush2.msra.mxu0 0.0
  %728 = vmatprep.subr.mxu0 0.0
  %729 = vmatpush2.msra.mxu0 0.0
  %730 = vmatprep.subr.mxu0 0.0
  %731 = vmatpush2.msra.mxu0 0.0
  %732 = vmatprep.subr.mxu0 0.0
  %733 = vmatpush2.msra.mxu0 0.0
  %734 = vmatprep.subr.mxu0 0.0
  %735 = vmatpush2.msra.mxu0 0.0
  %736 = vmatprep.mubr.f32.mxu0 0.0
  %737 = vmatmul.mubr.f32.gmra.mxu0 %v447
  %v738 = vpop.f32.mrf.mxu0
  %v739 = vadd.f32 0.0, %v738
  %v740 = vpop.f32.mrf.mxu0
  %741 = vmatprep.mubr.f32.mxu0 0.0
  %742 = vmatmul.mubr.f32.gmra.mxu0 %v448
  %v743 = vpop.f32.mrf.mxu0
  %v744 = vadd.f32 0.0, %v743
  %v745 = vpop.f32.mrf.mxu0
  %746 = vmatprep.mubr.f32.mxu0 0.0
  %747 = vmatmul.mubr.f32.gmra.mxu0 %v449
  %v748 = vpop.f32.mrf.mxu0
  %v749 = vadd.f32 0.0, %v748
  %v750 = vpop.f32.mrf.mxu0
  %751 = vmatprep.mubr.f32.mxu0 0.0
  %752 = vmatmul.mubr.f32.gmra.mxu0 %v450
  %v753 = vpop.f32.mrf.mxu0
  %v754 = vadd.f32 0.0, %v753
  %v755 = vpop.f32.mrf.mxu0
  %756 = vmatprep.mubr.f32.mxu0 0.0
  %757 = vmatmul.mubr.f32.gmra.mxu0 %v451
  %v758 = vpop.f32.mrf.mxu0
  %v759 = vadd.f32 0.0, %v758
  %v760 = vpop.f32.mrf.mxu0
  %761 = vmatprep.mubr.f32.mxu0 0.0
  %762 = vmatmul.mubr.f32.gmra.mxu0 %v452
  %v763 = vpop.f32.mrf.mxu0
  %v764 = vadd.f32 0.0, %v763
  %v765 = vpop.f32.mrf.mxu0
  %766 = vmatprep.mubr.f32.mxu0 0.0
  %767 = vmatmul.mubr.f32.gmra.mxu0 %v453
  %v768 = vpop.f32.mrf.mxu0
  %v769 = vadd.f32 0.0, %v768
  %v770 = vpop.f32.mrf.mxu0
  %771 = vmatprep.mubr.f32.mxu0 0.0
  %772 = vmatmul.mubr.f32.gmra.mxu0 %v454
  %v773 = vpop.f32.mrf.mxu0
  %v774 = vadd.f32 0.0, %v773
  %v775 = vpop.f32.mrf.mxu0
  %776 = vmatprep.mubr.f32.mxu0 0.0
  %777 = vmatmul.mubr.f32.gmra.mxu0 %v455
  %v778 = vpop.f32.mrf.mxu0
  %v779 = vadd.f32 0.0, %v778
  %v780 = vpop.f32.mrf.mxu0
  %781 = vmatprep.mubr.f32.mxu0 0.0
  %782 = vmatmul.mubr.f32.gmra.mxu0 %v456
  %v783 = vpop.f32.mrf.mxu0
  %v784 = vadd.f32 0.0, %v783
  %v785 = vpop.f32.mrf.mxu0
  %786 = vmatprep.mubr.f32.mxu0 0.0
  %787 = vmatmul.mubr.f32.gmra.mxu0 %v457
  %v788 = vpop.f32.mrf.mxu0
  %v789 = vadd.f32 0.0, %v788
  %v790 = vpop.f32.mrf.mxu0
  %791 = vmatprep.mubr.f32.mxu0 0.0
  %792 = vmatmul.mubr.f32.gmra.mxu0 %v458
  %v793 = vpop.f32.mrf.mxu0
  %v794 = vadd.f32 0.0, %v793
  %v795 = vpop.f32.mrf.mxu0
  %796 = vmatprep.mubr.f32.mxu0 0.0
  %797 = vmatmul.mubr.f32.gmra.mxu0 %v459
  %v798 = vpop.f32.mrf.mxu0
  %v799 = vadd.f32 0.0, %v798
  %v800 = vpop.f32.mrf.mxu0
  %801 = vmatprep.mubr.f32.mxu0 0.0
  %802 = vmatmul.mubr.f32.gmra.mxu0 %v460
  %v803 = vpop.f32.mrf.mxu0
  %v804 = vadd.f32 0.0, %v803
  %v805 = vpop.f32.mrf.mxu0
  %806 = vmatprep.mubr.f32.mxu0 0.0
  %807 = vmatmul.mubr.f32.gmra.mxu0 %v461
  %v808 = vpop.f32.mrf.mxu0
  %v809 = vadd.f32 0.0, %v808
  %v810 = vpop.f32.mrf.mxu0
  %811 = vmatprep.mubr.f32.mxu0 0.0
  %812 = vmatmul.mubr.f32.gmra.mxu0 %v462
  %v813 = vpop.f32.mrf.mxu0
  %v814 = vadd.f32 0.0, %v813
  %v815 = vpop.f32.mrf.mxu0
  %816 = vdwg.mxu0
  %v817 = vrot.slane %v578, 7
  %v818 = vrot.slane %v584, 7
  %v819 = vrot.slane %v590, 7
  %v820 = vrot.slane %v596, 7
  %v821 = vrot.slane %v602, 7
  %v822 = vrot.slane %v608, 7
  %v823 = vrot.slane %v614, 7
  %v824 = vrot.slane %v620, 7
  %v825 = vrot.slane %v626, 7
  %v826 = vrot.slane %v632, 7
  %v827 = vrot.slane %v638, 7
  %v828 = vrot.slane %v644, 7
  %v829 = vrot.slane %v650, 7
  %v830 = vrot.slane %v656, 7
  %v831 = vrot.slane %v662, 7
  %v832 = vrot.slane %v668, 7
  %vm833 = vcmp.lt.s32.totalorder %v62, 1
  %v834 = vsel %vm833, %v831, %v832
  %v835 = vsel %vm833, %v830, %v831
  %v836 = vsel %vm833, %v829, %v830
  %v837 = vsel %vm833, %v828, %v829
  %v838 = vsel %vm833, %v827, %v828
  %v839 = vsel %vm833, %v826, %v827
  %v840 = vsel %vm833, %v825, %v826
  %v841 = vsel %vm833, %v824, %v825
  %v842 = vsel %vm833, %v823, %v824
  %v843 = vsel %vm833, %v822, %v823
  %v844 = vsel %vm833, %v821, %v822
  %v845 = vsel %vm833, %v820, %v821
  %v846 = vsel %vm833, %v819, %v820
  %v847 = vsel %vm833, %v818, %v819
  %v848 = vsel %vm833, %v817, %v818
  %v849 = vsel %vm833, %v832, %v817
  %v850 = vmul.f32 %v849, %v126
  %v851 = vmul.f32 %v848, %v127
  %v852 = vmul.f32 %v847, %v128
  %v853 = vmul.f32 %v846, %v129
  %v854 = vmul.f32 %v845, %v130
  %v855 = vmul.f32 %v844, %v131
  %v856 = vmul.f32 %v843, %v132
  %v857 = vmul.f32 %v842, %v133
  %v858 = vmul.f32 %v841, %v134
  %v859 = vmul.f32 %v840, %v135
  %v860 = vmul.f32 %v839, %v136
  %v861 = vmul.f32 %v838, %v137
  %v862 = vmul.f32 %v837, %v138
  %v863 = vmul.f32 %v836, %v139
  %v864 = vmul.f32 %v835, %v140
  %v865 = vmul.f32 %v834, %v141
  %v866 = vrot.slane %v739, 1
  %v867 = vrot.slane %v744, 1
  %v868 = vrot.slane %v749, 1
  %v869 = vrot.slane %v754, 1
  %v870 = vrot.slane %v759, 1
  %v871 = vrot.slane %v764, 1
  %v872 = vrot.slane %v769, 1
  %v873 = vrot.slane %v774, 1
  %v874 = vrot.slane %v779, 1
  %v875 = vrot.slane %v784, 1
  %v876 = vrot.slane %v789, 1
  %v877 = vrot.slane %v794, 1
  %v878 = vrot.slane %v799, 1
  %v879 = vrot.slane %v804, 1
  %v880 = vrot.slane %v809, 1
  %v881 = vrot.slane %v814, 1
  %vm882 = vcmp.lt.s32.totalorder %v62, 7
  %v883 = vsel %vm882, %v880, %v881
  %v884 = vsel %vm882, %v879, %v880
  %v885 = vsel %vm882, %v878, %v879
  %v886 = vsel %vm882, %v877, %v878
  %v887 = vsel %vm882, %v876, %v877
  %v888 = vsel %vm882, %v875, %v876
  %v889 = vsel %vm882, %v874, %v875
  %v890 = vsel %vm882, %v873, %v874
  %v891 = vsel %vm882, %v872, %v873
  %v892 = vsel %vm882, %v871, %v872
  %v893 = vsel %vm882, %v870, %v871
  %v894 = vsel %vm882, %v869, %v870
  %v895 = vsel %vm882, %v868, %v869
  %v896 = vsel %vm882, %v867, %v868
  %v897 = vsel %vm882, %v866, %v867
  %v898 = vsel %vm882, %v881, %v866
  %v899 = vmul.f32 %v897, %v174
  %v900 = vmul.f32 %v896, %v175
  %v901 = vmul.f32 %v895, %v176
  %v902 = vmul.f32 %v894, %v177
  %v903 = vmul.f32 %v893, %v178
  %v904 = vmul.f32 %v892, %v179
  %v905 = vmul.f32 %v891, %v180
  %v906 = vmul.f32 %v890, %v181
  %v907 = vmul.f32 %v889, %v182
  %v908 = vmul.f32 %v888, %v183
  %v909 = vmul.f32 %v887, %v184
  %v910 = vmul.f32 %v886, %v185
  %v911 = vmul.f32 %v885, %v186
  %v912 = vmul.f32 %v884, %v187
  %v913 = vmul.f32 %v883, %v188
  %v914 = vmul.f32 %v898, %v189
  %v915 = vadd.f32 %v850, %v580
  %v916 = vadd.f32 %v851, %v586
  %v917 = vadd.f32 %v852, %v592
  %v918 = vadd.f32 %v853, %v598
  %v919 = vadd.f32 %v854, %v604
  %v920 = vadd.f32 %v855, %v610
  %v921 = vadd.f32 %v856, %v616
  %v922 = vadd.f32 %v857, %v622
  %v923 = vadd.f32 %v858, %v628
  %v924 = vadd.f32 %v859, %v634
  %v925 = vadd.f32 %v860, %v640
  %v926 = vadd.f32 %v861, %v646
  %v927 = vadd.f32 %v862, %v652
  %v928 = vadd.f32 %v863, %v658
  %v929 = vadd.f32 %v864, %v664
  %v930 = vadd.f32 %v865, %v670
  %v931 = vadd.f32 %v915, %v899
  %v932 = vadd.f32 %v916, %v900
  %v933 = vadd.f32 %v917, %v901
  %v934 = vadd.f32 %v918, %v902
  %v935 = vadd.f32 %v919, %v903
  %v936 = vadd.f32 %v920, %v904
  %v937 = vadd.f32 %v921, %v905
  %v938 = vadd.f32 %v922, %v906
  %v939 = vadd.f32 %v923, %v907
  %v940 = vadd.f32 %v924, %v908
  %v941 = vadd.f32 %v925, %v909
  %v942 = vadd.f32 %v926, %v910
  %v943 = vadd.f32 %v927, %v911
  %v944 = vadd.f32 %v928, %v912
  %v945 = vadd.f32 %v929, %v913
  %v946 = vadd.f32 %v930, %v914
  %v947 = vadd.f32 %v931, %v932
  %v948 = vadd.f32 %v947, %v933
  %v949 = vadd.f32 %v948, %v934
  %v950 = vadd.f32 %v949, %v935
  %v951 = vadd.f32 %v950, %v936
  %v952 = vadd.f32 %v951, %v937
  %v953 = vadd.f32 %v952, %v938
  %v954 = vadd.f32 %v953, %v939
  %v955 = vadd.f32 %v954, %v940
  %v956 = vadd.f32 %v955, %v941
  %v957 = vadd.f32 %v956, %v942
  %v958 = vadd.f32 %v957, %v943
  %v959 = vadd.f32 %v958, %v944
  %v960 = vadd.f32 %v959, %v945
  %v961 = vadd.f32 %v960, %v946
  %v962 = vrot.slane %v961, 4
  %v963 = vadd.f32 %v961, %v962
  %v964 = vrot.slane %v963, 2
  %v965 = vadd.f32 %v963, %v964
  %v966 = vrot.slane %v965, 1
  %v967 = vadd.f32 %v965, %v966
  %v968 = vmul.f32 %v931, %v931
  %v969 = vmul.f32 %v932, %v932
  %v970 = vmul.f32 %v933, %v933
  %v971 = vmul.f32 %v934, %v934
  %v972 = vmul.f32 %v935, %v935
  %v973 = vmul.f32 %v936, %v936
  %v974 = vmul.f32 %v937, %v937
  %v975 = vmul.f32 %v938, %v938
  %v976 = vmul.f32 %v939, %v939
  %v977 = vmul.f32 %v940, %v940
  %v978 = vmul.f32 %v941, %v941
  %v979 = vmul.f32 %v942, %v942
  %v980 = vmul.f32 %v943, %v943
  %v981 = vmul.f32 %v944, %v944
  %v982 = vmul.f32 %v945, %v945
  %v983 = vmul.f32 %v946, %v946
  %v984 = vadd.f32 %v968, %v969
  %v985 = vadd.f32 %v984, %v970
  %v986 = vadd.f32 %v985, %v971
  %v987 = vadd.f32 %v986, %v972
  %v988 = vadd.f32 %v987, %v973
  %v989 = vadd.f32 %v988, %v974
  %v990 = vadd.f32 %v989, %v975
  %v991 = vadd.f32 %v990, %v976
  %v992 = vadd.f32 %v991, %v977
  %v993 = vadd.f32 %v992, %v978
  %v994 = vadd.f32 %v993, %v979
  %v995 = vadd.f32 %v994, %v980
  %v996 = vadd.f32 %v995, %v981
  %v997 = vadd.f32 %v996, %v982
  %v998 = vadd.f32 %v997, %v983
  %v999 = vrot.slane %v998, 4
  %v1000 = vadd.f32 %v998, %v999
  %v1001 = vrot.slane %v1000, 2
  %v1002 = vadd.f32 %v1000, %v1001
  %v1003 = vrot.slane %v1002, 1
  %v1004 = vadd.f32 %v1002, %v1003
  %v1005 = vsel %vm248, %v967, %v1004
  %1006 = vmatprep.subr.mxu0 0.0
  %1007 = vmatpush1.msra.mxu0 %v54
  %1008 = vmatprep.subr.mxu0 0.0
  %1009 = vmatpush1.msra.mxu0 %v53
  %1010 = vmatprep.subr.mxu0 0.0
  %1011 = vmatpush1.msra.mxu0 %v52
  %1012 = vmatprep.subr.mxu0 0.0
  %1013 = vmatpush1.msra.mxu0 %v51
  %1014 = vmatprep.subr.mxu0 0.0
  %1015 = vmatpush1.msra.mxu0 %v50
  %1016 = vmatprep.subr.mxu0 0.0
  %1017 = vmatpush1.msra.mxu0 %v49
  %1018 = vmatprep.subr.mxu0 0.0
  %1019 = vmatpush1.msra.mxu0 %v48
  %1020 = vmatprep.subr.mxu0 0.0
  %1021 = vmatpush1.msra.mxu0 %v47
  %1022 = vmatprep.subr.mxu0 0.0
  %1023 = vmatpush1.msra.mxu0 %v46
  %1024 = vmatprep.subr.mxu0 0.0
  %1025 = vmatpush1.msra.mxu0 %v45
  %1026 = vmatprep.subr.mxu0 0.0
  %1027 = vmatpush1.msra.mxu0 %v44
  %1028 = vmatprep.subr.mxu0 0.0
  %1029 = vmatpush1.msra.mxu0 %v43
  %1030 = vmatprep.subr.mxu0 0.0
  %1031 = vmatpush1.msra.mxu0 %v42
  %1032 = vmatprep.subr.mxu0 0.0
  %1033 = vmatpush1.msra.mxu0 %v41
  %1034 = vmatprep.subr.mxu0 0.0
  %1035 = vmatpush1.msra.mxu0 %v40
  %1036 = vmatprep.subr.mxu0 0.0
  %1037 = vmatpush1.msra.mxu0 %v39
  %1038 = vmatprep.subr.mxu0 0.0
  %1039 = vmatpush2.msra.mxu0 0.0
  %1040 = vmatprep.subr.mxu0 0.0
  %1041 = vmatpush2.msra.mxu0 0.0
  %1042 = vmatprep.subr.mxu0 0.0
  %1043 = vmatpush2.msra.mxu0 0.0
  %1044 = vmatprep.subr.mxu0 0.0
  %1045 = vmatpush2.msra.mxu0 0.0
  %1046 = vmatprep.subr.mxu0 0.0
  %1047 = vmatpush2.msra.mxu0 0.0
  %1048 = vmatprep.subr.mxu0 0.0
  %1049 = vmatpush2.msra.mxu0 0.0
  %1050 = vmatprep.subr.mxu0 0.0
  %1051 = vmatpush2.msra.mxu0 0.0
  %1052 = vmatprep.subr.mxu0 0.0
  %1053 = vmatpush2.msra.mxu0 0.0
  %1054 = vmatprep.subr.mxu0 0.0
  %1055 = vmatpush2.msra.mxu0 0.0
  %1056 = vmatprep.subr.mxu0 0.0
  %1057 = vmatpush2.msra.mxu0 0.0
  %1058 = vmatprep.subr.mxu0 0.0
  %1059 = vmatpush2.msra.mxu0 0.0
  %1060 = vmatprep.subr.mxu0 0.0
  %1061 = vmatpush2.msra.mxu0 0.0
  %1062 = vmatprep.subr.mxu0 0.0
  %1063 = vmatpush2.msra.mxu0 0.0
  %1064 = vmatprep.subr.mxu0 0.0
  %1065 = vmatpush2.msra.mxu0 0.0
  %1066 = vmatprep.subr.mxu0 0.0
  %1067 = vmatpush2.msra.mxu0 0.0
  %1068 = vmatprep.subr.mxu0 0.0
  %1069 = vmatpush2.msra.mxu0 0.0
  %1070 = vmatprep.mubr.f32.mxu0 0.0
  %1071 = vmatmul.mubr.f32.gmra.mxu0 %v1005
  %v1072 = vpop.f32.mrf.mxu0
  %v1073 = vadd.f32 0.0, %v1072
  %v1074 = vpop.f32.mrf.mxu0
  %1075 = vdwg.mxu0
  %v1077 = vsel %vm320, %v1073, 0
  %1079 = vmatprep.subr.mxu0 0.0
  %1080 = vmatpush1.msra.mxu0 0.0
  %1081 = vmatprep.subr.mxu0 0.0
  %1082 = vmatpush1.msra.mxu0 0.0
  %1083 = vmatprep.subr.mxu0 0.0
  %1084 = vmatpush1.msra.mxu0 0.0
  %1085 = vmatprep.subr.mxu0 0.0
  %1086 = vmatpush1.msra.mxu0 0.0
  %1087 = vmatprep.subr.mxu0 0.0
  %1088 = vmatpush1.msra.mxu0 0.0
  %1089 = vmatprep.subr.mxu0 0.0
  %1090 = vmatpush1.msra.mxu0 0.0
  %1091 = vmatprep.subr.mxu0 0.0
  %1092 = vmatpush1.msra.mxu0 0.0
  %1093 = vmatprep.subr.mxu0 0.0
  %1094 = vmatpush1.msra.mxu0 0.0
  %1095 = vmatprep.subr.mxu0 0.0
  %1096 = vmatpush1.msra.mxu0 0.0
  %1097 = vmatprep.subr.mxu0 0.0
  %1098 = vmatpush1.msra.mxu0 0.0
  %1099 = vmatprep.subr.mxu0 0.0
  %1100 = vmatpush1.msra.mxu0 0.0
  %1101 = vmatprep.subr.mxu0 0.0
  %1102 = vmatpush1.msra.mxu0 0.0
  %1103 = vmatprep.subr.mxu0 0.0
  %1104 = vmatpush1.msra.mxu0 0.0
  %1105 = vmatprep.subr.mxu0 0.0
  %1106 = vmatpush1.msra.mxu0 0.0
  %1107 = vmatprep.subr.mxu0 0.0
  %1108 = vmatpush1.msra.mxu0 0.0
  %1109 = vmatprep.subr.mxu0 0.0
  %1110 = vmatpush1.msra.mxu0 %v55
  %1111 = vmatprep.subr.mxu0 0.0
  %1112 = vmatpush2.msra.mxu0 0.0
  %1113 = vmatprep.subr.mxu0 0.0
  %1114 = vmatpush2.msra.mxu0 0.0
  %1115 = vmatprep.subr.mxu0 0.0
  %1116 = vmatpush2.msra.mxu0 0.0
  %1117 = vmatprep.subr.mxu0 0.0
  %1118 = vmatpush2.msra.mxu0 0.0
  %1119 = vmatprep.subr.mxu0 0.0
  %1120 = vmatpush2.msra.mxu0 0.0
  %1121 = vmatprep.subr.mxu0 0.0
  %1122 = vmatpush2.msra.mxu0 0.0
  %1123 = vmatprep.subr.mxu0 0.0
  %1124 = vmatpush2.msra.mxu0 0.0
  %1125 = vmatprep.subr.mxu0 0.0
  %1126 = vmatpush2.msra.mxu0 0.0
  %1127 = vmatprep.subr.mxu0 0.0
  %1128 = vmatpush2.msra.mxu0 0.0
  %1129 = vmatprep.subr.mxu0 0.0
  %1130 = vmatpush2.msra.mxu0 0.0
  %1131 = vmatprep.subr.mxu0 0.0
  %1132 = vmatpush2.msra.mxu0 0.0
  %1133 = vmatprep.subr.mxu0 0.0
  %1134 = vmatpush2.msra.mxu0 0.0
  %1135 = vmatprep.subr.mxu0 0.0
  %1136 = vmatpush2.msra.mxu0 0.0
  %1137 = vmatprep.subr.mxu0 0.0
  %1138 = vmatpush2.msra.mxu0 0.0
  %1139 = vmatprep.subr.mxu0 0.0
  %1140 = vmatpush2.msra.mxu0 0.0
  %1141 = vmatprep.subr.mxu0 0.0
  %1142 = vmatpush2.msra.mxu0 0.0
  %1143 = vmatprep.mubr.f32.mxu0 0.0
  %1144 = vmatmul.mubr.f32.gmra.mxu0 %v1077
  %v1145 = vpop.f32.mrf.mxu0
  %v1146 = vadd.f32 0.0, %v1145
  %v1147 = vpop.f32.mrf.mxu0
  %1148 = vdwg.mxu0
  %v1149 = vmul.f32 %v1146, %v1146
  %v1151 = vrot.slane %v1149, 7
  %v1153 = vsub.f32 %v1146, %v1151
  %v1154 = vadd.f32 %v1153, 1e-05
  %v1155 = vrsqrt.pop %v1154
  %v1157 = vrot.slane %v1155, 1
  %v1159 = vmul.f32 %v58, %v1157
  %v1160 = vmul.f32 %v1146, %v1159
  %v1161 = vsub.f32 %v59, %v1160
  %v1162 = vlaneseq
  %v1163 = vshrl.u32 %v1162, 7
  %v1164 = vsub.s32 0, %v1163
  %v1165 = vrot.slane %v1159, %v1164
  %v1166 = vmul.f32 %v931, %v1165
  %v1167 = vmul.f32 %v932, %v1165
  %v1168 = vmul.f32 %v933, %v1165
  %v1169 = vmul.f32 %v934, %v1165
  %v1170 = vmul.f32 %v935, %v1165
  %v1171 = vmul.f32 %v936, %v1165
  %v1172 = vmul.f32 %v937, %v1165
  %v1173 = vmul.f32 %v938, %v1165
  %v1174 = vmul.f32 %v939, %v1165
  %v1175 = vmul.f32 %v940, %v1165
  %v1176 = vmul.f32 %v941, %v1165
  %v1177 = vmul.f32 %v942, %v1165
  %v1178 = vmul.f32 %v943, %v1165
  %v1179 = vmul.f32 %v944, %v1165
  %v1180 = vmul.f32 %v945, %v1165
  %v1181 = vmul.f32 %v946, %v1165
  %v1182 = vlaneseq
  %v1183 = vshrl.u32 %v1182, 7
  %v1184 = vsub.s32 0, %v1183
  %v1185 = vrot.slane %v1161, %v1184
  %v1186 = vadd.f32 %v1166, %v1185
  %v1187 = vadd.f32 %v1167, %v1185
  %v1188 = vadd.f32 %v1168, %v1185
  %v1189 = vadd.f32 %v1169, %v1185
  %v1190 = vadd.f32 %v1170, %v1185
  %v1191 = vadd.f32 %v1171, %v1185
  %v1192 = vadd.f32 %v1172, %v1185
  %v1193 = vadd.f32 %v1173, %v1185
  %v1194 = vadd.f32 %v1174, %v1185
  %v1195 = vadd.f32 %v1175, %v1185
  %v1196 = vadd.f32 %v1176, %v1185
  %v1197 = vadd.f32 %v1177, %v1185
  %v1198 = vadd.f32 %v1178, %v1185
  %v1199 = vadd.f32 %v1179, %v1185
  %v1200 = vadd.f32 %v1180, %v1185
  %v1201 = vadd.f32 %v1181, %v1185
  %v1202 = vmax.f32 %v1186, 0.0
  %v1203 = vmax.f32 %v1187, 0.0
  %v1204 = vmax.f32 %v1188, 0.0
  %v1205 = vmax.f32 %v1189, 0.0
  %v1206 = vmax.f32 %v1190, 0.0
  %v1207 = vmax.f32 %v1191, 0.0
  %v1208 = vmax.f32 %v1192, 0.0
  %v1209 = vmax.f32 %v1193, 0.0
  %v1210 = vmax.f32 %v1194, 0.0
  %v1211 = vmax.f32 %v1195, 0.0
  %v1212 = vmax.f32 %v1196, 0.0
  %v1213 = vmax.f32 %v1197, 0.0
  %v1214 = vmax.f32 %v1198, 0.0
  %v1215 = vmax.f32 %v1199, 0.0
  %v1216 = vmax.f32 %v1200, 0.0
  %v1217 = vmax.f32 %v1201, 0.0
  %v1218 = vld [vmem:[%s5] sm:$0xff]
  %v1219 = vld [vmem:[%s5 + $0x8] sm:$0xff]
  %v1220 = vld [vmem:[%s5 + $0x10] sm:$0xff]
  %v1221 = vld [vmem:[%s5 + $0x18] sm:$0xff]
  %v1222 = vld [vmem:[%s5 + $0x20] sm:$0xff]
  %v1223 = vld [vmem:[%s5 + $0x28] sm:$0xff]
  %v1224 = vld [vmem:[%s5 + $0x30] sm:$0xff]
  %v1225 = vld [vmem:[%s5 + $0x38] sm:$0xff]
  %v1226 = vld [vmem:[%s5 + $0x40] sm:$0xff]
  %v1227 = vld [vmem:[%s5 + $0x48] sm:$0xff]
  %v1228 = vld [vmem:[%s5 + $0x50] sm:$0xff]
  %v1229 = vld [vmem:[%s5 + $0x58] sm:$0xff]
  %v1230 = vld [vmem:[%s5 + $0x60] sm:$0xff]
  %v1231 = vld [vmem:[%s5 + $0x68] sm:$0xff]
  %v1232 = vld [vmem:[%s5 + $0x70] sm:$0xff]
  %v1233 = vld [vmem:[%s5 + $0x78] sm:$0xff]
  %v1234 = vld [vmem:[%s5 + $0x80] sm:$0xff]
  %v1235 = vld [vmem:[%s5 + $0x88] sm:$0xff]
  %v1236 = vld [vmem:[%s5 + $0x90] sm:$0xff]
  %v1237 = vld [vmem:[%s5 + $0x98] sm:$0xff]
  %v1238 = vld [vmem:[%s5 + $0xa0] sm:$0xff]
  %v1239 = vld [vmem:[%s5 + $0xa8] sm:$0xff]
  %v1240 = vld [vmem:[%s5 + $0xb0] sm:$0xff]
  %v1241 = vld [vmem:[%s5 + $0xb8] sm:$0xff]
  %v1242 = vld [vmem:[%s5 + $0xc0] sm:$0xff]
  %v1243 = vld [vmem:[%s5 + $0xc8] sm:$0xff]
  %v1244 = vld [vmem:[%s5 + $0xd0] sm:$0xff]
  %v1245 = vld [vmem:[%s5 + $0xd8] sm:$0xff]
  %v1246 = vld [vmem:[%s5 + $0xe0] sm:$0xff]
  %v1247 = vld [vmem:[%s5 + $0xe8] sm:$0xff]
  %v1248 = vld [vmem:[%s5 + $0xf0] sm:$0xff]
  %v1249 = vld [vmem:[%s5 + $0xf8] sm:$0xff]
  %v1250 = vld [vmem:[%s5 + $0x100] sm:$0xff]
  %v1251 = vld [vmem:[%s5 + $0x108] sm:$0xff]
  %v1252 = vld [vmem:[%s5 + $0x110] sm:$0xff]
  %v1253 = vld [vmem:[%s5 + $0x118] sm:$0xff]
  %v1254 = vld [vmem:[%s5 + $0x120] sm:$0xff]
  %v1255 = vld [vmem:[%s5 + $0x128] sm:$0xff]
  %v1256 = vld [vmem:[%s5 + $0x130] sm:$0xff]
  %v1257 = vld [vmem:[%s5 + $0x138] sm:$0xff]
  %v1258 = vld [vmem:[%s5 + $0x140] sm:$0xff]
  %v1259 = vld [vmem:[%s5 + $0x148] sm:$0xff]
  %v1260 = vld [vmem:[%s5 + $0x150] sm:$0xff]
  %v1261 = vld [vmem:[%s5 + $0x158] sm:$0xff]
  %v1262 = vld [vmem:[%s5 + $0x160] sm:$0xff]
  %v1263 = vld [vmem:[%s5 + $0x168] sm:$0xff]
  %v1264 = vld [vmem:[%s5 + $0x170] sm:$0xff]
  %v1265 = vld [vmem:[%s5 + $0x178] sm:$0xff]
  %1266 = vmatprep.subr.mxu0 %v1264
  %1267 = vmatpush1.msra.mxu0 %v1263
  %1268 = vmatprep.subr.mxu0 %v1261
  %1269 = vmatpush1.msra.mxu0 %v1260
  %1270 = vmatprep.subr.mxu0 %v1258
  %1271 = vmatpush1.msra.mxu0 %v1257
  %1272 = vmatprep.subr.mxu0 %v1255
  %1273 = vmatpush1.msra.mxu0 %v1254
  %1274 = vmatprep.subr.mxu0 %v1252
  %1275 = vmatpush1.msra.mxu0 %v1251
  %1276 = vmatprep.subr.mxu0 %v1249
  %1277 = vmatpush1.msra.mxu0 %v1248
  %1278 = vmatprep.subr.mxu0 %v1246
  %1279 = vmatpush1.msra.mxu0 %v1245
  %1280 = vmatprep.subr.mxu0 %v1243
  %1281 = vmatpush1.msra.mxu0 %v1242
  %1282 = vmatprep.subr.mxu0 %v1240
  %1283 = vmatpush1.msra.mxu0 %v1239
  %1284 = vmatprep.subr.mxu0 %v1237
  %1285 = vmatpush1.msra.mxu0 %v1236
  %1286 = vmatprep.subr.mxu0 %v1234
  %1287 = vmatpush1.msra.mxu0 %v1233
  %1288 = vmatprep.subr.mxu0 %v1231
  %1289 = vmatpush1.msra.mxu0 %v1230
  %1290 = vmatprep.subr.mxu0 %v1228
  %1291 = vmatpush1.msra.mxu0 %v1227
  %1292 = vmatprep.subr.mxu0 %v1225
  %1293 = vmatpush1.msra.mxu0 %v1224
  %1294 = vmatprep.subr.mxu0 %v1222
  %1295 = vmatpush1.msra.mxu0 %v1221
  %1296 = vmatprep.subr.mxu0 %v1219
  %1297 = vmatpush1.msra.mxu0 %v1218
  %1298 = vmatprep.subr.mxu0 0.0
  %1299 = vmatpush2.msra.mxu0 0.0
  %1300 = vmatprep.subr.mxu0 0.0
  %1301 = vmatpush2.msra.mxu0 0.0
  %1302 = vmatprep.subr.mxu0 0.0
  %1303 = vmatpush2.msra.mxu0 0.0
  %1304 = vmatprep.subr.mxu0 0.0
  %1305 = vmatpush2.msra.mxu0 0.0
  %1306 = vmatprep.subr.mxu0 0.0
  %1307 = vmatpush2.msra.mxu0 0.0
  %1308 = vmatprep.subr.mxu0 0.0
  %1309 = vmatpush2.msra.mxu0 0.0
  %1310 = vmatprep.subr.mxu0 0.0
  %1311 = vmatpush2.msra.mxu0 0.0
  %1312 = vmatprep.subr.mxu0 0.0
  %1313 = vmatpush2.msra.mxu0 0.0
  %1314 = vmatprep.subr.mxu0 0.0
  %1315 = vmatpush2.msra.mxu0 0.0
  %1316 = vmatprep.subr.mxu0 0.0
  %1317 = vmatpush2.msra.mxu0 0.0
  %1318 = vmatprep.subr.mxu0 0.0
  %1319 = vmatpush2.msra.mxu0 0.0
  %1320 = vmatprep.subr.mxu0 0.0
  %1321 = vmatpush2.msra.mxu0 0.0
  %1322 = vmatprep.subr.mxu0 0.0
  %1323 = vmatpush2.msra.mxu0 0.0
  %1324 = vmatprep.subr.mxu0 0.0
  %1325 = vmatpush2.msra.mxu0 0.0
  %1326 = vmatprep.subr.mxu0 0.0
  %1327 = vmatpush2.msra.mxu0 0.0
  %1328 = vmatprep.subr.mxu0 0.0
  %1329 = vmatpush2.msra.mxu0 0.0
  %1330 = vmatprep.mubr.f32.mxu0 0.0
  %1331 = vmatmul.mubr.f32.gmra.mxu0 %v1202
  %v1332 = vpop.f32.mrf.mxu0
  %v1333 = vadd.f32 0.0, %v1332
  %v1334 = vpop.f32.mrf.mxu0
  %v1335 = vadd.f32 0.0, %v1334
  %1336 = vmatprep.mubr.f32.mxu0 0.0
  %1337 = vmatmul.mubr.f32.gmra.mxu0 %v1203
  %v1338 = vpop.f32.mrf.mxu0
  %v1339 = vadd.f32 0.0, %v1338
  %v1340 = vpop.f32.mrf.mxu0
  %v1341 = vadd.f32 0.0, %v1340
  %1342 = vmatprep.mubr.f32.mxu0 0.0
  %1343 = vmatmul.mubr.f32.gmra.mxu0 %v1204
  %v1344 = vpop.f32.mrf.mxu0
  %v1345 = vadd.f32 0.0, %v1344
  %v1346 = vpop.f32.mrf.mxu0
  %v1347 = vadd.f32 0.0, %v1346
  %1348 = vmatprep.mubr.f32.mxu0 0.0
  %1349 = vmatmul.mubr.f32.gmra.mxu0 %v1205
  %v1350 = vpop.f32.mrf.mxu0
  %v1351 = vadd.f32 0.0, %v1350
  %v1352 = vpop.f32.mrf.mxu0
  %v1353 = vadd.f32 0.0, %v1352
  %1354 = vmatprep.mubr.f32.mxu0 0.0
  %1355 = vmatmul.mubr.f32.gmra.mxu0 %v1206
  %v1356 = vpop.f32.mrf.mxu0
  %v1357 = vadd.f32 0.0, %v1356
  %v1358 = vpop.f32.mrf.mxu0
  %v1359 = vadd.f32 0.0, %v1358
  %1360 = vmatprep.mubr.f32.mxu0 0.0
  %1361 = vmatmul.mubr.f32.gmra.mxu0 %v1207
  %v1362 = vpop.f32.mrf.mxu0
  %v1363 = vadd.f32 0.0, %v1362
  %v1364 = vpop.f32.mrf.mxu0
  %v1365 = vadd.f32 0.0, %v1364
  %1366 = vmatprep.mubr.f32.mxu0 0.0
  %1367 = vmatmul.mubr.f32.gmra.mxu0 %v1208
  %v1368 = vpop.f32.mrf.mxu0
  %v1369 = vadd.f32 0.0, %v1368
  %v1370 = vpop.f32.mrf.mxu0
  %v1371 = vadd.f32 0.0, %v1370
  %1372 = vmatprep.mubr.f32.mxu0 0.0
  %1373 = vmatmul.mubr.f32.gmra.mxu0 %v1209
  %v1374 = vpop.f32.mrf.mxu0
  %v1375 = vadd.f32 0.0, %v1374
  %v1376 = vpop.f32.mrf.mxu0
  %v1377 = vadd.f32 0.0, %v1376
  %1378 = vmatprep.mubr.f32.mxu0 0.0
  %1379 = vmatmul.mubr.f32.gmra.mxu0 %v1210
  %v1380 = vpop.f32.mrf.mxu0
  %v1381 = vadd.f32 0.0, %v1380
  %v1382 = vpop.f32.mrf.mxu0
  %v1383 = vadd.f32 0.0, %v1382
  %1384 = vmatprep.mubr.f32.mxu0 0.0
  %1385 = vmatmul.mubr.f32.gmra.mxu0 %v1211
  %v1386 = vpop.f32.mrf.mxu0
  %v1387 = vadd.f32 0.0, %v1386
  %v1388 = vpop.f32.mrf.mxu0
  %v1389 = vadd.f32 0.0, %v1388
  %1390 = vmatprep.mubr.f32.mxu0 0.0
  %1391 = vmatmul.mubr.f32.gmra.mxu0 %v1212
  %v1392 = vpop.f32.mrf.mxu0
  %v1393 = vadd.f32 0.0, %v1392
  %v1394 = vpop.f32.mrf.mxu0
  %v1395 = vadd.f32 0.0, %v1394
  %1396 = vmatprep.mubr.f32.mxu0 0.0
  %1397 = vmatmul.mubr.f32.gmra.mxu0 %v1213
  %v1398 = vpop.f32.mrf.mxu0
  %v1399 = vadd.f32 0.0, %v1398
  %v1400 = vpop.f32.mrf.mxu0
  %v1401 = vadd.f32 0.0, %v1400
  %1402 = vmatprep.mubr.f32.mxu0 0.0
  %1403 = vmatmul.mubr.f32.gmra.mxu0 %v1214
  %v1404 = vpop.f32.mrf.mxu0
  %v1405 = vadd.f32 0.0, %v1404
  %v1406 = vpop.f32.mrf.mxu0
  %v1407 = vadd.f32 0.0, %v1406
  %1408 = vmatprep.mubr.f32.mxu0 0.0
  %1409 = vmatmul.mubr.f32.gmra.mxu0 %v1215
  %v1410 = vpop.f32.mrf.mxu0
  %v1411 = vadd.f32 0.0, %v1410
  %v1412 = vpop.f32.mrf.mxu0
  %v1413 = vadd.f32 0.0, %v1412
  %1414 = vmatprep.mubr.f32.mxu0 0.0
  %1415 = vmatmul.mubr.f32.gmra.mxu0 %v1216
  %v1416 = vpop.f32.mrf.mxu0
  %v1417 = vadd.f32 0.0, %v1416
  %v1418 = vpop.f32.mrf.mxu0
  %v1419 = vadd.f32 0.0, %v1418
  %1420 = vmatprep.mubr.f32.mxu0 0.0
  %1421 = vmatmul.mubr.f32.gmra.mxu0 %v1217
  %v1422 = vpop.f32.mrf.mxu0
  %v1423 = vadd.f32 0.0, %v1422
  %v1424 = vpop.f32.mrf.mxu0
  %v1425 = vadd.f32 0.0, %v1424
  %1426 = vdwg.mxu0
  %1427 = vmatprep.subr.mxu0 0.0
  %1428 = vmatpush1.msra.mxu0 %v1265
  %1429 = vmatprep.subr.mxu0 0.0
  %1430 = vmatpush1.msra.mxu0 %v1262
  %1431 = vmatprep.subr.mxu0 0.0
  %1432 = vmatpush1.msra.mxu0 %v1259
  %1433 = vmatprep.subr.mxu0 0.0
  %1434 = vmatpush1.msra.mxu0 %v1256
  %1435 = vmatprep.subr.mxu0 0.0
  %1436 = vmatpush1.msra.mxu0 %v1253
  %1437 = vmatprep.subr.mxu0 0.0
  %1438 = vmatpush1.msra.mxu0 %v1250
  %1439 = vmatprep.subr.mxu0 0.0
  %1440 = vmatpush1.msra.mxu0 %v1247
  %1441 = vmatprep.subr.mxu0 0.0
  %1442 = vmatpush1.msra.mxu0 %v1244
  %1443 = vmatprep.subr.mxu0 0.0
  %1444 = vmatpush1.msra.mxu0 %v1241
  %1445 = vmatprep.subr.mxu0 0.0
  %1446 = vmatpush1.msra.mxu0 %v1238
  %1447 = vmatprep.subr.mxu0 0.0
  %1448 = vmatpush1.msra.mxu0 %v1235
  %1449 = vmatprep.subr.mxu0 0.0
  %1450 = vmatpush1.msra.mxu0 %v1232
  %1451 = vmatprep.subr.mxu0 0.0
  %1452 = vmatpush1.msra.mxu0 %v1229
  %1453 = vmatprep.subr.mxu0 0.0
  %1454 = vmatpush1.msra.mxu0 %v1226
  %1455 = vmatprep.subr.mxu0 0.0
  %1456 = vmatpush1.msra.mxu0 %v1223
  %1457 = vmatprep.subr.mxu0 0.0
  %1458 = vmatpush1.msra.mxu0 %v1220
  %1459 = vmatprep.subr.mxu0 0.0
  %1460 = vmatpush2.msra.mxu0 0.0
  %1461 = vmatprep.subr.mxu0 0.0
  %1462 = vmatpush2.msra.mxu0 0.0
  %1463 = vmatprep.subr.mxu0 0.0
  %1464 = vmatpush2.msra.mxu0 0.0
  %1465 = vmatprep.subr.mxu0 0.0
  %1466 = vmatpush2.msra.mxu0 0.0
  %1467 = vmatprep.subr.mxu0 0.0
  %1468 = vmatpush2.msra.mxu0 0.0
  %1469 = vmatprep.subr.mxu0 0.0
  %1470 = vmatpush2.msra.mxu0 0.0
  %1471 = vmatprep.subr.mxu0 0.0
  %1472 = vmatpush2.msra.mxu0 0.0
  %1473 = vmatprep.subr.mxu0 0.0
  %1474 = vmatpush2.msra.mxu0 0.0
  %1475 = vmatprep.subr.mxu0 0.0
  %1476 = vmatpush2.msra.mxu0 0.0
  %1477 = vmatprep.subr.mxu0 0.0
  %1478 = vmatpush2.msra.mxu0 0.0
  %1479 = vmatprep.subr.mxu0 0.0
  %1480 = vmatpush2.msra.mxu0 0.0
  %1481 = vmatprep.subr.mxu0 0.0
  %1482 = vmatpush2.msra.mxu0 0.0
  %1483 = vmatprep.subr.mxu0 0.0
  %1484 = vmatpush2.msra.mxu0 0.0
  %1485 = vmatprep.subr.mxu0 0.0
  %1486 = vmatpush2.msra.mxu0 0.0
  %1487 = vmatprep.subr.mxu0 0.0
  %1488 = vmatpush2.msra.mxu0 0.0
  %1489 = vmatprep.subr.mxu0 0.0
  %1490 = vmatpush2.msra.mxu0 0.0
  %1491 = vmatprep.mubr.f32.mxu0 0.0
  %1492 = vmatmul.mubr.f32.gmra.mxu0 %v1202
  %v1493 = vpop.f32.mrf.mxu0
  %v1494 = vadd.f32 0.0, %v1493
  %v1495 = vpop.f32.mrf.mxu0
  %1496 = vmatprep.mubr.f32.mxu0 0.0
  %1497 = vmatmul.mubr.f32.gmra.mxu0 %v1203
  %v1498 = vpop.f32.mrf.mxu0
  %v1499 = vadd.f32 0.0, %v1498
  %v1500 = vpop.f32.mrf.mxu0
  %1501 = vmatprep.mubr.f32.mxu0 0.0
  %1502 = vmatmul.mubr.f32.gmra.mxu0 %v1204
  %v1503 = vpop.f32.mrf.mxu0
  %v1504 = vadd.f32 0.0, %v1503
  %v1505 = vpop.f32.mrf.mxu0
  %1506 = vmatprep.mubr.f32.mxu0 0.0
  %1507 = vmatmul.mubr.f32.gmra.mxu0 %v1205
  %v1508 = vpop.f32.mrf.mxu0
  %v1509 = vadd.f32 0.0, %v1508
  %v1510 = vpop.f32.mrf.mxu0
  %1511 = vmatprep.mubr.f32.mxu0 0.0
  %1512 = vmatmul.mubr.f32.gmra.mxu0 %v1206
  %v1513 = vpop.f32.mrf.mxu0
  %v1514 = vadd.f32 0.0, %v1513
  %v1515 = vpop.f32.mrf.mxu0
  %1516 = vmatprep.mubr.f32.mxu0 0.0
  %1517 = vmatmul.mubr.f32.gmra.mxu0 %v1207
  %v1518 = vpop.f32.mrf.mxu0
  %v1519 = vadd.f32 0.0, %v1518
  %v1520 = vpop.f32.mrf.mxu0
  %1521 = vmatprep.mubr.f32.mxu0 0.0
  %1522 = vmatmul.mubr.f32.gmra.mxu0 %v1208
  %v1523 = vpop.f32.mrf.mxu0
  %v1524 = vadd.f32 0.0, %v1523
  %v1525 = vpop.f32.mrf.mxu0
  %1526 = vmatprep.mubr.f32.mxu0 0.0
  %1527 = vmatmul.mubr.f32.gmra.mxu0 %v1209
  %v1528 = vpop.f32.mrf.mxu0
  %v1529 = vadd.f32 0.0, %v1528
  %v1530 = vpop.f32.mrf.mxu0
  %1531 = vmatprep.mubr.f32.mxu0 0.0
  %1532 = vmatmul.mubr.f32.gmra.mxu0 %v1210
  %v1533 = vpop.f32.mrf.mxu0
  %v1534 = vadd.f32 0.0, %v1533
  %v1535 = vpop.f32.mrf.mxu0
  %1536 = vmatprep.mubr.f32.mxu0 0.0
  %1537 = vmatmul.mubr.f32.gmra.mxu0 %v1211
  %v1538 = vpop.f32.mrf.mxu0
  %v1539 = vadd.f32 0.0, %v1538
  %v1540 = vpop.f32.mrf.mxu0
  %1541 = vmatprep.mubr.f32.mxu0 0.0
  %1542 = vmatmul.mubr.f32.gmra.mxu0 %v1212
  %v1543 = vpop.f32.mrf.mxu0
  %v1544 = vadd.f32 0.0, %v1543
  %v1545 = vpop.f32.mrf.mxu0
  %1546 = vmatprep.mubr.f32.mxu0 0.0
  %1547 = vmatmul.mubr.f32.gmra.mxu0 %v1213
  %v1548 = vpop.f32.mrf.mxu0
  %v1549 = vadd.f32 0.0, %v1548
  %v1550 = vpop.f32.mrf.mxu0
  %1551 = vmatprep.mubr.f32.mxu0 0.0
  %1552 = vmatmul.mubr.f32.gmra.mxu0 %v1214
  %v1553 = vpop.f32.mrf.mxu0
  %v1554 = vadd.f32 0.0, %v1553
  %v1555 = vpop.f32.mrf.mxu0
  %1556 = vmatprep.mubr.f32.mxu0 0.0
  %1557 = vmatmul.mubr.f32.gmra.mxu0 %v1215
  %v1558 = vpop.f32.mrf.mxu0
  %v1559 = vadd.f32 0.0, %v1558
  %v1560 = vpop.f32.mrf.mxu0
  %1561 = vmatprep.mubr.f32.mxu0 0.0
  %1562 = vmatmul.mubr.f32.gmra.mxu0 %v1216
  %v1563 = vpop.f32.mrf.mxu0
  %v1564 = vadd.f32 0.0, %v1563
  %v1565 = vpop.f32.mrf.mxu0
  %1566 = vmatprep.mubr.f32.mxu0 0.0
  %1567 = vmatmul.mubr.f32.gmra.mxu0 %v1217
  %v1568 = vpop.f32.mrf.mxu0
  %v1569 = vadd.f32 0.0, %v1568
  %v1570 = vpop.f32.mrf.mxu0
  %1571 = vdwg.mxu0
  %v1572 = vrot.slane %v1333, 7
  %v1573 = vrot.slane %v1339, 7
  %v1574 = vrot.slane %v1345, 7
  %v1575 = vrot.slane %v1351, 7
  %v1576 = vrot.slane %v1357, 7
  %v1577 = vrot.slane %v1363, 7
  %v1578 = vrot.slane %v1369, 7
  %v1579 = vrot.slane %v1375, 7
  %v1580 = vrot.slane %v1381, 7
  %v1581 = vrot.slane %v1387, 7
  %v1582 = vrot.slane %v1393, 7
  %v1583 = vrot.slane %v1399, 7
  %v1584 = vrot.slane %v1405, 7
  %v1585 = vrot.slane %v1411, 7
  %v1586 = vrot.slane %v1417, 7
  %v1587 = vrot.slane %v1423, 7
  %v1588 = vsel %vm833, %v1586, %v1587
  %v1589 = vsel %vm833, %v1585, %v1586
  %v1590 = vsel %vm833, %v1584, %v1585
  %v1591 = vsel %vm833, %v1583, %v1584
  %v1592 = vsel %vm833, %v1582, %v1583
  %v1593 = vsel %vm833, %v1581, %v1582
  %v1594 = vsel %vm833, %v1580, %v1581
  %v1595 = vsel %vm833, %v1579, %v1580
  %v1596 = vsel %vm833, %v1578, %v1579
  %v1597 = vsel %vm833, %v1577, %v1578
  %v1598 = vsel %vm833, %v1576, %v1577
  %v1599 = vsel %vm833, %v1575, %v1576
  %v1600 = vsel %vm833, %v1574, %v1575
  %v1601 = vsel %vm833, %v1573, %v1574
  %v1602 = vsel %vm833, %v1572, %v1573
  %v1603 = vsel %vm833, %v1587, %v1572
  %v1604 = vmul.f32 %v1603, %v126
  %v1605 = vmul.f32 %v1602, %v127
  %v1606 = vmul.f32 %v1601, %v128
  %v1607 = vmul.f32 %v1600, %v129
  %v1608 = vmul.f32 %v1599, %v130
  %v1609 = vmul.f32 %v1598, %v131
  %v1610 = vmul.f32 %v1597, %v132
  %v1611 = vmul.f32 %v1596, %v133
  %v1612 = vmul.f32 %v1595, %v134
  %v1613 = vmul.f32 %v1594, %v135
  %v1614 = vmul.f32 %v1593, %v136
  %v1615 = vmul.f32 %v1592, %v137
  %v1616 = vmul.f32 %v1591, %v138
  %v1617 = vmul.f32 %v1590, %v139
  %v1618 = vmul.f32 %v1589, %v140
  %v1619 = vmul.f32 %v1588, %v141
  %v1620 = vrot.slane %v1494, 1
  %v1621 = vrot.slane %v1499, 1
  %v1622 = vrot.slane %v1504, 1
  %v1623 = vrot.slane %v1509, 1
  %v1624 = vrot.slane %v1514, 1
  %v1625 = vrot.slane %v1519, 1
  %v1626 = vrot.slane %v1524, 1
  %v1627 = vrot.slane %v1529, 1
  %v1628 = vrot.slane %v1534, 1
  %v1629 = vrot.slane %v1539, 1
  %v1630 = vrot.slane %v1544, 1
  %v1631 = vrot.slane %v1549, 1
  %v1632 = vrot.slane %v1554, 1
  %v1633 = vrot.slane %v1559, 1
  %v1634 = vrot.slane %v1564, 1
  %v1635 = vrot.slane %v1569, 1
  %v1636 = vsel %vm882, %v1634, %v1635
  %v1637 = vsel %vm882, %v1633, %v1634
  %v1638 = vsel %vm882, %v1632, %v1633
  %v1639 = vsel %vm882, %v1631, %v1632
  %v1640 = vsel %vm882, %v1630, %v1631
  %v1641 = vsel %vm882, %v1629, %v1630
  %v1642 = vsel %vm882, %v1628, %v1629
  %v1643 = vsel %vm882, %v1627, %v1628
  %v1644 = vsel %vm882, %v1626, %v1627
  %v1645 = vsel %vm882, %v1625, %v1626
  %v1646 = vsel %vm882, %v1624, %v1625
  %v1647 = vsel %vm882, %v1623, %v1624
  %v1648 = vsel %vm882, %v1622, %v1623
  %v1649 = vsel %vm882, %v1621, %v1622
  %v1650 = vsel %vm882, %v1620, %v1621
  %v1651 = vsel %vm882, %v1635, %v1620
  %v1652 = vmul.f32 %v1650, %v174
  %v1653 = vmul.f32 %v1649, %v175
  %v1654 = vmul.f32 %v1648, %v176
  %v1655 = vmul.f32 %v1647, %v177
  %v1656 = vmul.f32 %v1646, %v178
  %v1657 = vmul.f32 %v1645, %v179
  %v1658 = vmul.f32 %v1644, %v180
  %v1659 = vmul.f32 %v1643, %v181
  %v1660 = vmul.f32 %v1642, %v182
  %v1661 = vmul.f32 %v1641, %v183
  %v1662 = vmul.f32 %v1640, %v184
  %v1663 = vmul.f32 %v1639, %v185
  %v1664 = vmul.f32 %v1638, %v186
  %v1665 = vmul.f32 %v1637, %v187
  %v1666 = vmul.f32 %v1636, %v188
  %v1667 = vmul.f32 %v1651, %v189
  %v1668 = vadd.f32 %v1604, %v1335
  %v1669 = vadd.f32 %v1605, %v1341
  %v1670 = vadd.f32 %v1606, %v1347
  %v1671 = vadd.f32 %v1607, %v1353
  %v1672 = vadd.f32 %v1608, %v1359
  %v1673 = vadd.f32 %v1609, %v1365
  %v1674 = vadd.f32 %v1610, %v1371
  %v1675 = vadd.f32 %v1611, %v1377
  %v1676 = vadd.f32 %v1612, %v1383
  %v1677 = vadd.f32 %v1613, %v1389
  %v1678 = vadd.f32 %v1614, %v1395
  %v1679 = vadd.f32 %v1615, %v1401
  %v1680 = vadd.f32 %v1616, %v1407
  %v1681 = vadd.f32 %v1617, %v1413
  %v1682 = vadd.f32 %v1618, %v1419
  %v1683 = vadd.f32 %v1619, %v1425
  %v1684 = vadd.f32 %v1668, %v1652
  %v1685 = vadd.f32 %v1669, %v1653
  %v1686 = vadd.f32 %v1670, %v1654
  %v1687 = vadd.f32 %v1671, %v1655
  %v1688 = vadd.f32 %v1672, %v1656
  %v1689 = vadd.f32 %v1673, %v1657
  %v1690 = vadd.f32 %v1674, %v1658
  %v1691 = vadd.f32 %v1675, %v1659
  %v1692 = vadd.f32 %v1676, %v1660
  %v1693 = vadd.f32 %v1677, %v1661
  %v1694 = vadd.f32 %v1678, %v1662
  %v1695 = vadd.f32 %v1679, %v1663
  %v1696 = vadd.f32 %v1680, %v1664
  %v1697 = vadd.f32 %v1681, %v1665
  %v1698 = vadd.f32 %v1682, %v1666
  %v1699 = vadd.f32 %v1683, %v1667
  %v1700 = vlaneseq
  %v1701 = vshrl.u32 %v1700, 7
  %v1702 = vsub.s32 0, %v1701
  %v1703 = vrot.slane %v60, %v1702
  %v1704 = vadd.f32 %v1684, %v1703
  %v1705 = vadd.f32 %v1685, %v1703
  %v1706 = vadd.f32 %v1686, %v1703
  %v1707 = vadd.f32 %v1687, %v1703
  %v1708 = vadd.f32 %v1688, %v1703
  %v1709 = vadd.f32 %v1689, %v1703
  %v1710 = vadd.f32 %v1690, %v1703
  %v1711 = vadd.f32 %v1691, %v1703
  %v1712 = vadd.f32 %v1692, %v1703
  %v1713 = vadd.f32 %v1693, %v1703
  %v1714 = vadd.f32 %v1694, %v1703
  %v1715 = vadd.f32 %v1695, %v1703
  %v1716 = vadd.f32 %v1696, %v1703
  %v1717 = vadd.f32 %v1697, %v1703
  %v1718 = vadd.f32 %v1698, %v1703
  %v1719 = vadd.f32 %v1699, %v1703
  %v1720 = vadd.f32 %v1704, %v23
  %v1721 = vadd.f32 %v1705, %v24
  %v1722 = vadd.f32 %v1706, %v25
  %v1723 = vadd.f32 %v1707, %v26
  %v1724 = vadd.f32 %v1708, %v27
  %v1725 = vadd.f32 %v1709, %v28
  %v1726 = vadd.f32 %v1710, %v29
  %v1727 = vadd.f32 %v1711, %v30
  %v1728 = vadd.f32 %v1712, %v31
  %v1729 = vadd.f32 %v1713, %v32
  %v1730 = vadd.f32 %v1714, %v33
  %v1731 = vadd.f32 %v1715, %v34
  %v1732 = vadd.f32 %v1716, %v35
  %v1733 = vadd.f32 %v1717, %v36
  %v1734 = vadd.f32 %v1718, %v37
  %v1735 = vadd.f32 %v1719, %v38
  %1736 = vst [vmem:[%s6] sm:$0xff] %v1720
  %1737 = vst [vmem:[%s6 + $0x8] sm:$0xff] %v1721
  %1738 = vst [vmem:[%s6 + $0x10] sm:$0xff] %v1722
  %1739 = vst [vmem:[%s6 + $0x18] sm:$0xff] %v1723
  %1740 = vst [vmem:[%s6 + $0x20] sm:$0xff] %v1724
  %1741 = vst [vmem:[%s6 + $0x28] sm:$0xff] %v1725
  %1742 = vst [vmem:[%s6 + $0x30] sm:$0xff] %v1726
  %1743 = vst [vmem:[%s6 + $0x38] sm:$0xff] %v1727
  %1744 = vst [vmem:[%s6 + $0x40] sm:$0xff] %v1728
  %1745 = vst [vmem:[%s6 + $0x48] sm:$0xff] %v1729
  %1746 = vst [vmem:[%s6 + $0x50] sm:$0xff] %v1730
  %1747 = vst [vmem:[%s6 + $0x58] sm:$0xff] %v1731
  %1748 = vst [vmem:[%s6 + $0x60] sm:$0xff] %v1732
  %1749 = vst [vmem:[%s6 + $0x68] sm:$0xff] %v1733
  %1750 = vst [vmem:[%s6 + $0x70] sm:$0xff] %v1734
  %1751 = vst [vmem:[%s6 + $0x78] sm:$0xff] %v1735
  // Predicated region
  $region26: #{basic_block_forward.1} parent=0 // pred_check
    _
  $region27: #{basic_block_forward.1} parent=0 // pred_check_branch
    %1753 = sbr.rel (0) target = $region29
  $region28: #{basic_block_forward.1} parent=0 // pred_region
    _
  $region29: #{basic_block_forward.1} parent=0 // pred_fallthru
    _
  // Predicated region
  $region30: #{basic_block_forward.1} parent=0 // pred_check
    _
  $region31: #{basic_block_forward.1} parent=0 // pred_check_branch
    %1755 = sbr.rel (0) target = $region33
  $region32: #{basic_block_forward.1} parent=0 // pred_region
    _
  $region33: #{basic_block_forward.1} parent=0 // pred_fallthru
    _

</llo_original>
